<compile_context>
chip_gen: v5e
topology: v5e:2x2
jax: 0.10.0
libtpu: 0.0.40
codegen_flags: <defaults>
</compile_context>

<pallas_src>
import functools

import jax
import jax.numpy as jnp
from jax.experimental import pallas as pl
from jax.experimental.pallas import tpu as pltpu

LANE = 128
SUBLANE = 8


def _round_up(x, m):
    return ((x + m - 1) // m) * m


def fold_bn(gamma, beta, running_mean, running_var, eps=1e-5):
    scale = gamma * jax.lax.rsqrt(running_var + eps)
    shift = beta - running_mean * scale
    return scale, shift


def _conv_block_kernel(p_ref, w1_ref, w2_ref, b1_ref, b2_ref, o_ref, mid_ref,
                       *, H, W, Wp):
    """Fused (conv3x3 -> BN shift -> ReLU) x 2 for one image.

    p_ref:   (H*W, K1)     bf16 stage-1 im2col patches (9*Cin lanes, 0-padded)
    w1_ref:  (K1, C)       bf16 stage-1 weights, BN1 scale folded in
    w2_ref:  (3, 3, C, C)  bf16 stage-2 weights, BN2 scale folded in
    b*_ref:  (1, C)        f32 folded BN shifts
    o_ref:   (H, W, C)     bf16 output tile
    mid_ref: (H+2, Wp, C)  f32 padded stage-1 activation (never leaves VMEM)
    """
    C = o_ref.shape[-1]

    # Zero the halo every step (border-only, cheap).  Scratch is per-core and
    # the batch axis is 'parallel', so nothing may rely on step-0 init.
    mid_ref[0:1, :, :] = jnp.zeros((1, Wp, C), jnp.float32)
    mid_ref[H + 1:H + 2, :, :] = jnp.zeros((1, Wp, C), jnp.float32)
    mid_ref[:, W:Wp, :] = jnp.zeros((H + 2, Wp - W, C), jnp.float32)

    # ---- stage 1: one im2col matmul -> +shift -> ReLU -> f32 VMEM interior.
    y1 = jnp.dot(p_ref[...], w1_ref[...], preferred_element_type=jnp.float32)
    y1 = jnp.maximum(y1 + b1_ref[...], 0.0)
    mid_ref[1:H + 1, 0:W, :] = y1.reshape(H, W, C)

    # ---- stage 2: 3x3 conv as 9 full-width matmuls over a flattened view.
    # Valid data sits at rows [1, H], cols [0, W); rows 0 / H+1 and cols
    # W..Wp-1 are zero, so circular rolls realign the dx=+-1 taps exactly.
    n_rows = (H + 2) * Wp
    m = mid_ref[...].reshape(n_rows, C)             # pure view: Wp % 8 == 0
    shifted = (pltpu.roll(m, 1, axis=0),            # dx = 0  (reads col w-1)
               m,                                   # dx = 1
               pltpu.roll(m, n_rows - 1, axis=0))   # dx = 2  (reads col w+1)

    acc = None
    for dy in range(3):
        for dx in range(3):
            # dy offset = sublane-aligned row slice (dy*Wp is a multiple of 8).
            lhs = shifted[dx][dy * Wp:dy * Wp + H * Wp, :].astype(jnp.bfloat16)
            contrib = jnp.dot(lhs, w2_ref[dy, dx],
                              preferred_element_type=jnp.float32)
            acc = contrib if acc is None else acc + contrib

    y2 = jnp.maximum(acc + b2_ref[...], 0.0)
    # One realignment slice at the very end drops the Wp-W invalid columns.
    o_ref[...] = y2.reshape(H, Wp, C)[:, :W, :].astype(o_ref.dtype)


@jax.jit
def conv_block_forward(x_nchw, params):
    """ConvBlock.forward: NCHW in, NCHW out (matches the PyTorch module)."""
    N, Cin, H, W = x_nchw.shape
    Cout = params["w1"].shape[-1]
    Cout_p = _round_up(Cout, LANE)
    K1 = _round_up(9 * Cin, LANE)
    Wp = _round_up(W + 2, SUBLANE)   # sublane-multiple padded width (f32 mid)

    # Fold eval-mode BatchNorm: scale goes into the conv weights (per output
    # channel); only the shift is passed into the kernel.
    s1, b1 = fold_bn(params["g1"], params["be1"], params["m1"], params["v1"])
    s2, b2 = fold_bn(params["g2"], params["be2"], params["m2"], params["v2"])

    w1f = (params["w1"] * s1).reshape(9 * Cin, Cout)     # HWIO -> (9*Cin, Cout)
    w1f = jnp.pad(w1f, ((0, K1 - 9 * Cin), (0, Cout_p - Cout))
                  ).astype(jnp.bfloat16)
    w2f = jnp.pad(params["w2"] * s2,
                  ((0, 0), (0, 0), (0, Cout_p - Cout), (0, Cout_p - Cout))
                  ).astype(jnp.bfloat16)
    pad_c = lambda v: jnp.pad(v.astype(jnp.float32),
                              (0, Cout_p - Cout)).reshape(1, Cout_p)
    b1r, b2r = pad_c(b1), pad_c(b2)

    # NCHW -> NHWC and stage-1 im2col: 9 taps x Cin packed into the lane axis
    # (zero-padded to 128).  Same HBM footprint as lane-padding Cin to 128.
    x = jnp.transpose(x_nchw, (0, 2, 3, 1))
    xpad = jnp.pad(x, ((0, 0), (1, 1), (1, 1), (0, 0)))
    patches = jnp.concatenate(
        [xpad[:, dy:dy + H, dx:dx + W, :] for dy in range(3) for dx in range(3)],
        axis=-1)                                          # (N, H, W, 9*Cin)
    p = jnp.pad(patches, ((0, 0), (0, 0), (0, 0), (0, K1 - 9 * Cin)))
    p = p.astype(jnp.bfloat16).reshape(N, H * W, K1)

    kernel = functools.partial(_conv_block_kernel, H=H, W=W, Wp=Wp)
    out = pl.pallas_call(
        kernel,
        out_shape=jax.ShapeDtypeStruct((N, H, W, Cout_p), jnp.bfloat16),
        grid_spec=pltpu.PrefetchScalarGridSpec(
            num_scalar_prefetch=0,
            grid=(N,),
            in_specs=[
                pl.BlockSpec((None, H * W, K1), lambda n: (n, 0, 0)),
                # TODO(synk): weights/shifts have constant index maps; on v7x
                # single-buffer them (pipeline_mode=pl.Buffered(1)) to reclaim
                # their double-buffer VMEM when strips are pushed to the limit.
                pl.BlockSpec((K1, Cout_p), lambda n: (0, 0)),
                pl.BlockSpec((3, 3, Cout_p, Cout_p), lambda n: (0, 0, 0, 0)),
                pl.BlockSpec((1, Cout_p), lambda n: (0, 0)),
                pl.BlockSpec((1, Cout_p), lambda n: (0, 0)),
            ],
            out_specs=pl.BlockSpec((None, H, W, Cout_p),
                                   lambda n: (n, 0, 0, 0)),
            scratch_shapes=[
                pltpu.VMEM((H + 2, Wp, Cout_p), jnp.float32),  # stage-1 act
            ],
        ),
        compiler_params=pltpu.CompilerParams(
            dimension_semantics=("parallel",),
            vmem_limit_bytes=48 * 1024 * 1024,
        ),
    )(p, w1f, w2f, b1r, b2r)

    out = out[..., :Cout].astype(x_nchw.dtype)   # drop lane padding, restore dtype
    return jnp.transpose(out, (0, 3, 1, 2))      # NHWC -> NCHW (module API)


def _reference(x_nchw, params):
    """Pure-JAX reference with the same numerical contract as the kernel
    (BN-scale-folded bf16 weights, bf16 operands, f32 accumulation,
    bf16 intermediate and output)."""
    s1, b1 = fold_bn(params["g1"], params["be1"], params["m1"], params["v1"])
    s2, b2 = fold_bn(params["g2"], params["be2"], params["m2"], params["v2"])
    w1f = (params["w1"] * s1).astype(jnp.bfloat16).astype(jnp.float32)
    w2f = (params["w2"] * s2).astype(jnp.bfloat16).astype(jnp.float32)
    dn = ("NHWC", "HWIO", "NHWC")
    hi = jax.lax.Precision.HIGHEST

    x = jnp.transpose(x_nchw, (0, 2, 3, 1)).astype(jnp.bfloat16).astype(jnp.float32)
    y = jax.lax.conv_general_dilated(x, w1f, (1, 1), "SAME",
                                     dimension_numbers=dn, precision=hi)
    y = jnp.maximum(y + b1, 0.0)
    y = y.astype(jnp.bfloat16).astype(jnp.float32)
    y = jax.lax.conv_general_dilated(y, w2f, (1, 1), "SAME",
                                     dimension_numbers=dn, precision=hi)
    y = jnp.maximum(y + b2, 0.0).astype(jnp.bfloat16).astype(jnp.float32)
    return jnp.transpose(y, (0, 3, 1, 2))


if __name__ == "__main__":
    N, Cin, Cout, H, W = 2, 4, 8, 16, 16

    key = jax.random.PRNGKey(0)
    ks = jax.random.split(key, 11)

    params = {
        # Conv weights stored HWIO (PyTorch stores OIHW; shapes equivalent).
        "w1": jax.random.normal(ks[0], (3, 3, Cin, Cout), jnp.float32) * 0.1,
        "w2": jax.random.normal(ks[1], (3, 3, Cout, Cout), jnp.float32) * 0.1,
        # BatchNorm2d(Cout) parameters + running stats (eval mode).
        "g1": jax.random.uniform(ks[2], (Cout,), minval=0.5, maxval=1.5),
        "be1": jax.random.normal(ks[3], (Cout,)) * 0.1,
        "m1": jax.random.normal(ks[4], (Cout,)) * 0.1,
        "v1": jax.random.uniform(ks[5], (Cout,), minval=0.5, maxval=1.5),
        "g2": jax.random.uniform(ks[6], (Cout,), minval=0.5, maxval=1.5),
        "be2": jax.random.normal(ks[7], (Cout,)) * 0.1,
        "m2": jax.random.normal(ks[8], (Cout,)) * 0.1,
        "v2": jax.random.uniform(ks[9], (Cout,), minval=0.5, maxval=1.5),
    }

    x = jax.random.normal(ks[10], (N, Cin, H, W), jnp.float32)  # NCHW like PyTorch

    out = jax.block_until_ready(conv_block_forward(x, params))
    ref = jax.block_until_ready(_reference(x, params))

    assert out.shape == (N, Cout, H, W), out.shape
    max_err = float(jnp.max(jnp.abs(out - ref)))
    assert jnp.allclose(out, ref, atol=2e-2, rtol=2e-2), max_err

    print("KERNEL_OK")
</pallas_src>

<mosaic_0001>
module attributes {stable_mosaic.version = 11 : i64} {
  func.func @_conv_block_kernel(%arg0: i32, %arg1: memref<1x256x128xbf16, #tpu.memory_space<vmem>>, %arg2: memref<128x128xbf16, #tpu.memory_space<vmem>>, %arg3: memref<3x3x128x128xbf16, #tpu.memory_space<vmem>>, %arg4: memref<1x128xf32, #tpu.memory_space<vmem>>, %arg5: memref<1x128xf32, #tpu.memory_space<vmem>>, %arg6: memref<1x16x16x128xbf16, #tpu.memory_space<vmem>>, %arg7: memref<18x24x128xf32, #tpu.memory_space<vmem>>) attributes {dimension_semantics = [#tpu.dimension_semantics<parallel>], iteration_bounds = array<i64: 2>, scalar_prefetch = 0 : i64, scratch_operands = 1 : i64, tpu.core_type = #tpu.core_type<tc>, window_params = [{transform_indices = @transform_0, window_bounds = array<i64: 1, 256, 128>}, {pipeline_mode = #tpu.pipeline_mode<synchronous>, transform_indices = @transform_1, window_bounds = array<i64: 128, 128>}, {pipeline_mode = #tpu.pipeline_mode<synchronous>, transform_indices = @transform_2, window_bounds = array<i64: 3, 3, 128, 128>}, {pipeline_mode = #tpu.pipeline_mode<synchronous>, transform_indices = @transform_3, window_bounds = array<i64: 1, 128>}, {pipeline_mode = #tpu.pipeline_mode<synchronous>, transform_indices = @transform_4, window_bounds = array<i64: 1, 128>}, {transform_indices = @transform_5, window_bounds = array<i64: 1, 16, 16, 128>}]} {
    %cst = arith.constant 0.000000e+00 : f32
    %0 = vector.broadcast %cst : f32 to vector<1x24x128xf32>
    %c0 = arith.constant 0 : index
    %c0_0 = arith.constant 0 : index
    %c0_1 = arith.constant 0 : index
    %1 = vector.load %arg7[%c0, %c0_0, %c0_1] : memref<18x24x128xf32, #tpu.memory_space<vmem>>, vector<1x24x128xf32>
    tpu.vector_store %arg7[%c0, %c0_0, %c0_1], %0 {strides = array<i32>} : memref<18x24x128xf32, #tpu.memory_space<vmem>>, vector<1x24x128xf32>,
    %cst_2 = arith.constant 0.000000e+00 : f32
    %2 = vector.broadcast %cst_2 : f32 to vector<1x24x128xf32>
    %c17 = arith.constant 17 : index
    %c0_3 = arith.constant 0 : index
    %c0_4 = arith.constant 0 : index
    %3 = vector.load %arg7[%c17, %c0_3, %c0_4] : memref<18x24x128xf32, #tpu.memory_space<vmem>>, vector<1x24x128xf32>
    tpu.vector_store %arg7[%c17, %c0_3, %c0_4], %2 {strides = array<i32>} : memref<18x24x128xf32, #tpu.memory_space<vmem>>, vector<1x24x128xf32>,
    %cst_5 = arith.constant 0.000000e+00 : f32
    %4 = vector.broadcast %cst_5 : f32 to vector<18x8x128xf32>
    %c0_6 = arith.constant 0 : index
    %c16 = arith.constant 16 : index
    %c0_7 = arith.constant 0 : index
    %5 = vector.load %arg7[%c0_6, %c16, %c0_7] : memref<18x24x128xf32, #tpu.memory_space<vmem>>, vector<18x8x128xf32>
    tpu.vector_store %arg7[%c0_6, %c16, %c0_7], %4 {strides = array<i32>} : memref<18x24x128xf32, #tpu.memory_space<vmem>>, vector<18x8x128xf32>,
    %c0_8 = arith.constant 0 : index
    %c0_9 = arith.constant 0 : index
    %c0_10 = arith.constant 0 : index
    %6 = vector.load %arg1[%c0_8, %c0_9, %c0_10] : memref<1x256x128xbf16, #tpu.memory_space<vmem>>, vector<1x256x128xbf16>
    %7 = vector.shape_cast %6 : vector<1x256x128xbf16> to vector<256x128xbf16>
    %c0_11 = arith.constant 0 : index
    %c0_12 = arith.constant 0 : index
    %8 = vector.load %arg2[%c0_11, %c0_12] : memref<128x128xbf16, #tpu.memory_space<vmem>>, vector<128x128xbf16>
    %cst_13 = arith.constant dense<0.000000e+00> : vector<256x128xf32>
    %9 = tpu.matmul %7, %8, %cst_13 {dimension_numbers = #tpu.dot_dimension_numbers<[1], [0], [0], [1], [0, 0, 1, 1], [], []>} : vector<256x128xbf16>, vector<128x128xbf16>, vector<256x128xf32> -> vector<256x128xf32>
    %c0_14 = arith.constant 0 : index
    %c0_15 = arith.constant 0 : index
    %10 = vector.load %arg4[%c0_14, %c0_15] : memref<1x128xf32, #tpu.memory_space<vmem>>, vector<1x128xf32>
    %11 = vector.broadcast %10 : vector<1x128xf32> to vector<256x128xf32>
    %12 = arith.addf %9, %11 : vector<256x128xf32>
    %cst_16 = arith.constant 0.000000e+00 : f32
    %13 = vector.broadcast %cst_16 : f32 to vector<256x128xf32>
    %14 = arith.maximumf %12, %13 : vector<256x128xf32>
    %15 = vector.shape_cast %14 : vector<256x128xf32> to vector<16x16x128xf32>
    %c1 = arith.constant 1 : index
    %c0_17 = arith.constant 0 : index
    %c0_18 = arith.constant 0 : index
    %16 = vector.load %arg7[%c1, %c0_17, %c0_18] : memref<18x24x128xf32, #tpu.memory_space<vmem>>, vector<16x16x128xf32>
    tpu.vector_store %arg7[%c1, %c0_17, %c0_18], %15 {strides = array<i32>} : memref<18x24x128xf32, #tpu.memory_space<vmem>>, vector<16x16x128xf32>,
    %c0_19 = arith.constant 0 : index
    %c0_20 = arith.constant 0 : index
    %c0_21 = arith.constant 0 : index
    %17 = vector.load %arg7[%c0_19, %c0_20, %c0_21] : memref<18x24x128xf32, #tpu.memory_space<vmem>>, vector<18x24x128xf32>
    %18 = vector.shape_cast %17 : vector<18x24x128xf32> to vector<432x128xf32>
    %c1_i32 = arith.constant 1 : i32
    %19 = tpu.dynamic_rotate %18 by %c1_i32 dim 0 : vector<432x128xf32>, i32 -> vector<432x128xf32>
    %c431_i32 = arith.constant 431 : i32
    %20 = tpu.dynamic_rotate %18 by %c431_i32 dim 0 : vector<432x128xf32>, i32 -> vector<432x128xf32>
    %21 = vector.extract_strided_slice %19 {offsets = [0, 0], sizes = [384, 128], strides = [1, 1]} : vector<432x128xf32> to vector<384x128xf32>
    %22 = arith.truncf %21 : vector<384x128xf32> to vector<384x128xbf16>
    %c0_22 = arith.constant 0 : index
    %c0_23 = arith.constant 0 : index
    %c0_24 = arith.constant 0 : index
    %c0_25 = arith.constant 0 : index
    %23 = vector.load %arg3[%c0_22, %c0_23, %c0_24, %c0_25] : memref<3x3x128x128xbf16, #tpu.memory_space<vmem>>, vector<1x1x128x128xbf16>
    %24 = vector.shape_cast %23 : vector<1x1x128x128xbf16> to vector<128x128xbf16>
    %cst_26 = arith.constant dense<0.000000e+00> : vector<384x128xf32>
    %25 = tpu.matmul %22, %24, %cst_26 {dimension_numbers = #tpu.dot_dimension_numbers<[1], [0], [0], [1], [0, 0, 1, 1], [], []>} : vector<384x128xbf16>, vector<128x128xbf16>, vector<384x128xf32> -> vector<384x128xf32>
    %26 = vector.extract_strided_slice %18 {offsets = [0, 0], sizes = [384, 128], strides = [1, 1]} : vector<432x128xf32> to vector<384x128xf32>
    %27 = arith.truncf %26 : vector<384x128xf32> to vector<384x128xbf16>
    %c0_27 = arith.constant 0 : index
    %c1_28 = arith.constant 1 : index
    %c0_29 = arith.constant 0 : index
    %c0_30 = arith.constant 0 : index
    %28 = vector.load %arg3[%c0_27, %c1_28, %c0_29, %c0_30] : memref<3x3x128x128xbf16, #tpu.memory_space<vmem>>, vector<1x1x128x128xbf16>
    %29 = vector.shape_cast %28 : vector<1x1x128x128xbf16> to vector<128x128xbf16>
    %cst_31 = arith.constant dense<0.000000e+00> : vector<384x128xf32>
    %30 = tpu.matmul %27, %29, %cst_31 {dimension_numbers = #tpu.dot_dimension_numbers<[1], [0], [0], [1], [0, 0, 1, 1], [], []>} : vector<384x128xbf16>, vector<128x128xbf16>, vector<384x128xf32> -> vector<384x128xf32>
    %31 = arith.addf %25, %30 : vector<384x128xf32>
    %32 = vector.extract_strided_slice %20 {offsets = [0, 0], sizes = [384, 128], strides = [1, 1]} : vector<432x128xf32> to vector<384x128xf32>
    %33 = arith.truncf %32 : vector<384x128xf32> to vector<384x128xbf16>
    %c0_32 = arith.constant 0 : index
    %c2 = arith.constant 2 : index
    %c0_33 = arith.constant 0 : index
    %c0_34 = arith.constant 0 : index
    %34 = vector.load %arg3[%c0_32, %c2, %c0_33, %c0_34] : memref<3x3x128x128xbf16, #tpu.memory_space<vmem>>, vector<1x1x128x128xbf16>
    %35 = vector.shape_cast %34 : vector<1x1x128x128xbf16> to vector<128x128xbf16>
    %cst_35 = arith.constant dense<0.000000e+00> : vector<384x128xf32>
    %36 = tpu.matmul %33, %35, %cst_35 {dimension_numbers = #tpu.dot_dimension_numbers<[1], [0], [0], [1], [0, 0, 1, 1], [], []>} : vector<384x128xbf16>, vector<128x128xbf16>, vector<384x128xf32> -> vector<384x128xf32>
    %37 = arith.addf %31, %36 : vector<384x128xf32>
    %38 = vector.extract_strided_slice %19 {offsets = [24, 0], sizes = [384, 128], strides = [1, 1]} : vector<432x128xf32> to vector<384x128xf32>
    %39 = arith.truncf %38 : vector<384x128xf32> to vector<384x128xbf16>
    %c1_36 = arith.constant 1 : index
    %c0_37 = arith.constant 0 : index
    %c0_38 = arith.constant 0 : index
    %c0_39 = arith.constant 0 : index
    %40 = vector.load %arg3[%c1_36, %c0_37, %c0_38, %c0_39] : memref<3x3x128x128xbf16, #tpu.memory_space<vmem>>, vector<1x1x128x128xbf16>
    %41 = vector.shape_cast %40 : vector<1x1x128x128xbf16> to vector<128x128xbf16>
    %cst_40 = arith.constant dense<0.000000e+00> : vector<384x128xf32>
    %42 = tpu.matmul %39, %41, %cst_40 {dimension_numbers = #tpu.dot_dimension_numbers<[1], [0], [0], [1], [0, 0, 1, 1], [], []>} : vector<384x128xbf16>, vector<128x128xbf16>, vector<384x128xf32> -> vector<384x128xf32>
    %43 = arith.addf %37, %42 : vector<384x128xf32>
    %44 = vector.extract_strided_slice %18 {offsets = [24, 0], sizes = [384, 128], strides = [1, 1]} : vector<432x128xf32> to vector<384x128xf32>
    %45 = arith.truncf %44 : vector<384x128xf32> to vector<384x128xbf16>
    %c1_41 = arith.constant 1 : index
    %c1_42 = arith.constant 1 : index
    %c0_43 = arith.constant 0 : index
    %c0_44 = arith.constant 0 : index
    %46 = vector.load %arg3[%c1_41, %c1_42, %c0_43, %c0_44] : memref<3x3x128x128xbf16, #tpu.memory_space<vmem>>, vector<1x1x128x128xbf16>
    %47 = vector.shape_cast %46 : vector<1x1x128x128xbf16> to vector<128x128xbf16>
    %cst_45 = arith.constant dense<0.000000e+00> : vector<384x128xf32>
    %48 = tpu.matmul %45, %47, %cst_45 {dimension_numbers = #tpu.dot_dimension_numbers<[1], [0], [0], [1], [0, 0, 1, 1], [], []>} : vector<384x128xbf16>, vector<128x128xbf16>, vector<384x128xf32> -> vector<384x128xf32>
    %49 = arith.addf %43, %48 : vector<384x128xf32>
    %50 = vector.extract_strided_slice %20 {offsets = [24, 0], sizes = [384, 128], strides = [1, 1]} : vector<432x128xf32> to vector<384x128xf32>
    %51 = arith.truncf %50 : vector<384x128xf32> to vector<384x128xbf16>
    %c1_46 = arith.constant 1 : index
    %c2_47 = arith.constant 2 : index
    %c0_48 = arith.constant 0 : index
    %c0_49 = arith.constant 0 : index
    %52 = vector.load %arg3[%c1_46, %c2_47, %c0_48, %c0_49] : memref<3x3x128x128xbf16, #tpu.memory_space<vmem>>, vector<1x1x128x128xbf16>
    %53 = vector.shape_cast %52 : vector<1x1x128x128xbf16> to vector<128x128xbf16>
    %cst_50 = arith.constant dense<0.000000e+00> : vector<384x128xf32>
    %54 = tpu.matmul %51, %53, %cst_50 {dimension_numbers = #tpu.dot_dimension_numbers<[1], [0], [0], [1], [0, 0, 1, 1], [], []>} : vector<384x128xbf16>, vector<128x128xbf16>, vector<384x128xf32> -> vector<384x128xf32>
    %55 = arith.addf %49, %54 : vector<384x128xf32>
    %56 = vector.extract_strided_slice %19 {offsets = [48, 0], sizes = [384, 128], strides = [1, 1]} : vector<432x128xf32> to vector<384x128xf32>
    %57 = arith.truncf %56 : vector<384x128xf32> to vector<384x128xbf16>
    %c2_51 = arith.constant 2 : index
    %c0_52 = arith.constant 0 : index
    %c0_53 = arith.constant 0 : index
    %c0_54 = arith.constant 0 : index
    %58 = vector.load %arg3[%c2_51, %c0_52, %c0_53, %c0_54] : memref<3x3x128x128xbf16, #tpu.memory_space<vmem>>, vector<1x1x128x128xbf16>
    %59 = vector.shape_cast %58 : vector<1x1x128x128xbf16> to vector<128x128xbf16>
    %cst_55 = arith.constant dense<0.000000e+00> : vector<384x128xf32>
    %60 = tpu.matmul %57, %59, %cst_55 {dimension_numbers = #tpu.dot_dimension_numbers<[1], [0], [0], [1], [0, 0, 1, 1], [], []>} : vector<384x128xbf16>, vector<128x128xbf16>, vector<384x128xf32> -> vector<384x128xf32>
    %61 = arith.addf %55, %60 : vector<384x128xf32>
    %62 = vector.extract_strided_slice %18 {offsets = [48, 0], sizes = [384, 128], strides = [1, 1]} : vector<432x128xf32> to vector<384x128xf32>
    %63 = arith.truncf %62 : vector<384x128xf32> to vector<384x128xbf16>
    %c2_56 = arith.constant 2 : index
    %c1_57 = arith.constant 1 : index
    %c0_58 = arith.constant 0 : index
    %c0_59 = arith.constant 0 : index
    %64 = vector.load %arg3[%c2_56, %c1_57, %c0_58, %c0_59] : memref<3x3x128x128xbf16, #tpu.memory_space<vmem>>, vector<1x1x128x128xbf16>
    %65 = vector.shape_cast %64 : vector<1x1x128x128xbf16> to vector<128x128xbf16>
    %cst_60 = arith.constant dense<0.000000e+00> : vector<384x128xf32>
    %66 = tpu.matmul %63, %65, %cst_60 {dimension_numbers = #tpu.dot_dimension_numbers<[1], [0], [0], [1], [0, 0, 1, 1], [], []>} : vector<384x128xbf16>, vector<128x128xbf16>, vector<384x128xf32> -> vector<384x128xf32>
    %67 = arith.addf %61, %66 : vector<384x128xf32>
    %68 = vector.extract_strided_slice %20 {offsets = [48, 0], sizes = [384, 128], strides = [1, 1]} : vector<432x128xf32> to vector<384x128xf32>
    %69 = arith.truncf %68 : vector<384x128xf32> to vector<384x128xbf16>
    %c2_61 = arith.constant 2 : index
    %c2_62 = arith.constant 2 : index
    %c0_63 = arith.constant 0 : index
    %c0_64 = arith.constant 0 : index
    %70 = vector.load %arg3[%c2_61, %c2_62, %c0_63, %c0_64] : memref<3x3x128x128xbf16, #tpu.memory_space<vmem>>, vector<1x1x128x128xbf16>
    %71 = vector.shape_cast %70 : vector<1x1x128x128xbf16> to vector<128x128xbf16>
    %cst_65 = arith.constant dense<0.000000e+00> : vector<384x128xf32>
    %72 = tpu.matmul %69, %71, %cst_65 {dimension_numbers = #tpu.dot_dimension_numbers<[1], [0], [0], [1], [0, 0, 1, 1], [], []>} : vector<384x128xbf16>, vector<128x128xbf16>, vector<384x128xf32> -> vector<384x128xf32>
    %73 = arith.addf %67, %72 : vector<384x128xf32>
    %c0_66 = arith.constant 0 : index
    %c0_67 = arith.constant 0 : index
    %74 = vector.load %arg5[%c0_66, %c0_67] : memref<1x128xf32, #tpu.memory_space<vmem>>, vector<1x128xf32>
    %75 = vector.broadcast %74 : vector<1x128xf32> to vector<384x128xf32>
    %76 = arith.addf %73, %75 : vector<384x128xf32>
    %cst_68 = arith.constant 0.000000e+00 : f32
    %77 = vector.broadcast %cst_68 : f32 to vector<384x128xf32>
    %78 = arith.maximumf %76, %77 : vector<384x128xf32>
    %79 = vector.shape_cast %78 : vector<384x128xf32> to vector<16x24x128xf32>
    %80 = vector.extract_strided_slice %79 {offsets = [0, 0, 0], sizes = [16, 16, 128], strides = [1, 1, 1]} : vector<16x24x128xf32> to vector<16x16x128xf32>
    %81 = arith.truncf %80 : vector<16x16x128xf32> to vector<16x16x128xbf16>
    %c0_69 = arith.constant 0 : index
    %c0_70 = arith.constant 0 : index
    %c0_71 = arith.constant 0 : index
    %c0_72 = arith.constant 0 : index
    %82 = vector.load %arg6[%c0_69, %c0_70, %c0_71, %c0_72] : memref<1x16x16x128xbf16, #tpu.memory_space<vmem>>, vector<1x16x16x128xbf16>
    %83 = vector.shape_cast %82 : vector<1x16x16x128xbf16> to vector<16x16x128xbf16>
    %84 = vector.shape_cast %81 : vector<16x16x128xbf16> to vector<1x16x16x128xbf16>
    tpu.vector_store %arg6[%c0_69, %c0_70, %c0_71, %c0_72], %84 {strides = array<i32>} : memref<1x16x16x128xbf16, #tpu.memory_space<vmem>>, vector<1x16x16x128xbf16>,
    return
  }
  func.func @transform_0(%arg0: i32) -> (i32, i32, i32) {
    %c0_i32 = arith.constant 0 : i32
    %c0_i32_0 = arith.constant 0 : i32
    %c0_i32_1 = arith.constant 0 : i32
    return %arg0, %c0_i32, %c0_i32_0 : i32, i32, i32
  }
  func.func @transform_1(%arg0: i32) -> (i32, i32) {
    %c0_i32 = arith.constant 0 : i32
    %c0_i32_0 = arith.constant 0 : i32
    %c0_i32_1 = arith.constant 0 : i32
    return %c0_i32, %c0_i32_0 : i32, i32
  }
  func.func @transform_2(%arg0: i32) -> (i32, i32, i32, i32) {
    %c0_i32 = arith.constant 0 : i32
    %c0_i32_0 = arith.constant 0 : i32
    %c0_i32_1 = arith.constant 0 : i32
    %c0_i32_2 = arith.constant 0 : i32
    %c0_i32_3 = arith.constant 0 : i32
    return %c0_i32, %c0_i32_0, %c0_i32_1, %c0_i32_2 : i32, i32, i32, i32
  }
  func.func @transform_3(%arg0: i32) -> (i32, i32) {
    %c0_i32 = arith.constant 0 : i32
    %c0_i32_0 = arith.constant 0 : i32
    %c0_i32_1 = arith.constant 0 : i32
    return %c0_i32, %c0_i32_0 : i32, i32
  }
  func.func @transform_4(%arg0: i32) -> (i32, i32) {
    %c0_i32 = arith.constant 0 : i32
    %c0_i32_0 = arith.constant 0 : i32
    %c0_i32_1 = arith.constant 0 : i32
    return %c0_i32, %c0_i32_0 : i32, i32
  }
  func.func @transform_5(%arg0: i32) -> (i32, i32, i32, i32) {
    %c0_i32 = arith.constant 0 : i32
    %c0_i32_0 = arith.constant 0 : i32
    %c0_i32_1 = arith.constant 0 : i32
    %c0_i32_2 = arith.constant 0 : i32
    return %arg0, %c0_i32, %c0_i32_0, %c0_i32_1 : i32, i32, i32, i32
  }
}

</mosaic_0001>

<llo_original>
// kernel: conv_block_forward.1
$region0: #{conv_block_forward.1}
  #allocation0 [shape = 'u32[]', space=smem, size = 0x4, offset = 0x4, fixed_abs, tag = 'smem constant byte address 0x4 - core index']
  #allocation1 [shape = 'u32[72,128]{1,0:T(1,128)}', space=vmem, size = 0x9000, scoped, tag = 'internal scratch']
  #allocation2 [shape = 'f32[18,24,128]{2,1,0:T(8,128)}', space=vmem, size = 0x36000, scoped, tag = 'scratch operand']
  %s0 = inlined_call_operand.vmem [shape: bf16[2,256,128], index: 0, kind: input, shape index: {}]
  %s1 = inlined_call_operand.vmem [shape: bf16[128,128], index: 1, kind: input, shape index: {}]
  %s2 = inlined_call_operand.vmem [shape: bf16[3,3,128,128], index: 2, kind: input, shape index: {}]
  %s3 = inlined_call_operand.vmem [shape: f32[1,128], index: 3, kind: input, shape index: {}]
  %s4 = inlined_call_operand.vmem [shape: f32[1,128], index: 4, kind: input, shape index: {}]
  %s5 = inlined_call_operand.vmem [shape: bf16[2,16,16,128], index: 5, kind: output, shape index: {}]
  %s6 = sld [smem:[#allocation0]]
  $region53: #{conv_block_forward.1} parent=0
    _
  %s8 = ssub.s32 1, %s6
  %s9 = scalar_select 0, %s8, %s6
  loop: start=0, step=1, limit=4
  $region2: #{conv_block_forward.1} parent=0 // loop_pre_header
    _
  $region3: #{conv_block_forward.1} parent=0 // loop_header
    %s11 = sphi 0, %s15
    %p12 = scmp.ge.s32.totalorder %s11, 4
    %s21 = sphi 0, %s23
    %s24 = sphi 0, %s21
    %s25 = sphi 0, %s24
    %s41 = sphi 0, %s25
    %s45 = sphi 0, %s45
    %s47 = sphi 0, %s45
    %s48 = sphi 0, %s47
    %s62 = sphi 0, %s48
    %s66 = sphi 0, %s66
    %s68 = sphi 0, %s66
    %s69 = sphi 0, %s68
    %s83 = sphi 0, %s69
    %s87 = sphi 0, %s87
    %s89 = sphi 0, %s87
    %s90 = sphi 0, %s89
    %s104 = sphi 0, %s90
    %s108 = sphi 0, %s108
    %s110 = sphi 0, %s108
    %s111 = sphi 0, %s110
    %s125 = sphi 0, %s111
    %s131 = sphi 0, %s133
    %s134 = sphi 0, %s131
    %s135 = sphi 0, %s134
    %s151 = sphi 0, %s135
  $region4: #{conv_block_forward.1} parent=0 // loop_header_branch
    %14 = sbr.rel (%p12) target = $region8
  $region5: #{conv_block_forward.1} parent=0 // loop_body
    %s16 = ssub.s32 %s11, 1
    %s17 = ssub.s32 %s11, 2
    %s18 = sadd.s32 %s11, 1
    %s19 = ssub.s32 %s11, %s18
    %p20 = scmp.eq.s32.totalorder %s19, 0
    %s22 = sadd.s32 %s21, 1
    %s23 = scalar_select %p20, %s21, %s22
    %p26 = pneg %p20
    %p27 = scmp.eq.s32.totalorder %s11, 1
    %p28 = por %p26, %p27
    %p29 = scmp.ne.s32.totalorder %s21, %s24
    %p30 = scmp.eq.s32.totalorder %s11, 0
    %p31 = por %p29, %p30
    %p32 = scmp.ne.s32.totalorder %s21, %s24
    %p33 = scmp.eq.s32.totalorder %s16, 1
    %p34 = por %p32, %p33
    %p35 = scmp.ne.s32.totalorder %s24, %s25
    %p36 = scmp.eq.s32.totalorder %s16, 0
    %p37 = por %p35, %p36
    %p38 = scmp.ne.s32.totalorder %s24, %s25
    %p39 = scmp.eq.s32.totalorder %s17, 1
    %p40 = por %p38, %p39
    %p42 = scmp.ne.s32.totalorder %s25, %s41
    %p43 = scmp.eq.s32.totalorder %s17, 0
    %p44 = por %p42, %p43
    %s46 = sadd.s32 %s45, 1
    %p49 = scmp.eq.s32.totalorder %s11, 1
    %p50 = scmp.ne.s32.totalorder %s45, %s47
    %p51 = scmp.eq.s32.totalorder %s11, 0
    %p52 = por %p50, %p51
    %p53 = scmp.ne.s32.totalorder %s45, %s47
    %p54 = scmp.eq.s32.totalorder %s16, 1
    %p55 = por %p53, %p54
    %p56 = scmp.ne.s32.totalorder %s47, %s48
    %p57 = scmp.eq.s32.totalorder %s16, 0
    %p58 = por %p56, %p57
    %p59 = scmp.ne.s32.totalorder %s47, %s48
    %p60 = scmp.eq.s32.totalorder %s17, 1
    %p61 = por %p59, %p60
    %p63 = scmp.ne.s32.totalorder %s48, %s62
    %p64 = scmp.eq.s32.totalorder %s17, 0
    %p65 = por %p63, %p64
    %s67 = sadd.s32 %s66, 1
    %p70 = scmp.eq.s32.totalorder %s11, 1
    %p71 = scmp.ne.s32.totalorder %s66, %s68
    %p72 = scmp.eq.s32.totalorder %s11, 0
    %p73 = por %p71, %p72
    %p74 = scmp.ne.s32.totalorder %s66, %s68
    %p75 = scmp.eq.s32.totalorder %s16, 1
    %p76 = por %p74, %p75
    %p77 = scmp.ne.s32.totalorder %s68, %s69
    %p78 = scmp.eq.s32.totalorder %s16, 0
    %p79 = por %p77, %p78
    %p80 = scmp.ne.s32.totalorder %s68, %s69
    %p81 = scmp.eq.s32.totalorder %s17, 1
    %p82 = por %p80, %p81
    %p84 = scmp.ne.s32.totalorder %s69, %s83
    %p85 = scmp.eq.s32.totalorder %s17, 0
    %p86 = por %p84, %p85
    %s88 = sadd.s32 %s87, 1
    %p91 = scmp.eq.s32.totalorder %s11, 1
    %p92 = scmp.ne.s32.totalorder %s87, %s89
    %p93 = scmp.eq.s32.totalorder %s11, 0
    %p94 = por %p92, %p93
    %p95 = scmp.ne.s32.totalorder %s87, %s89
    %p96 = scmp.eq.s32.totalorder %s16, 1
    %p97 = por %p95, %p96
    %p98 = scmp.ne.s32.totalorder %s89, %s90
    %p99 = scmp.eq.s32.totalorder %s16, 0
    %p100 = por %p98, %p99
    %p101 = scmp.ne.s32.totalorder %s89, %s90
    %p102 = scmp.eq.s32.totalorder %s17, 1
    %p103 = por %p101, %p102
    %p105 = scmp.ne.s32.totalorder %s90, %s104
    %p106 = scmp.eq.s32.totalorder %s17, 0
    %p107 = por %p105, %p106
    %s109 = sadd.s32 %s108, 1
    %p112 = scmp.eq.s32.totalorder %s11, 1
    %p113 = scmp.ne.s32.totalorder %s108, %s110
    %p114 = scmp.eq.s32.totalorder %s11, 0
    %p115 = por %p113, %p114
    %p116 = scmp.ne.s32.totalorder %s108, %s110
    %p117 = scmp.eq.s32.totalorder %s16, 1
    %p118 = por %p116, %p117
    %p119 = scmp.ne.s32.totalorder %s110, %s111
    %p120 = scmp.eq.s32.totalorder %s16, 0
    %p121 = por %p119, %p120
    %p122 = scmp.ne.s32.totalorder %s110, %s111
    %p123 = scmp.eq.s32.totalorder %s17, 1
    %p124 = por %p122, %p123
    %p126 = scmp.ne.s32.totalorder %s111, %s125
    %p127 = scmp.eq.s32.totalorder %s17, 0
    %p128 = por %p126, %p127
    %s129 = ssub.s32 %s11, %s18
    %p130 = scmp.eq.s32.totalorder %s129, 0
    %s132 = sadd.s32 %s131, 1
    %s133 = scalar_select %p130, %s131, %s132
    %p136 = pneg %p130
    %p137 = scmp.eq.s32.totalorder %s11, 1
    %p138 = por %p136, %p137
    %p139 = scmp.ne.s32.totalorder %s131, %s134
    %p140 = scmp.eq.s32.totalorder %s11, 0
    %p141 = por %p139, %p140
    %p142 = scmp.ne.s32.totalorder %s131, %s134
    %p143 = scmp.eq.s32.totalorder %s16, 1
    %p144 = por %p142, %p143
    %p145 = scmp.ne.s32.totalorder %s134, %s135
    %p146 = scmp.eq.s32.totalorder %s16, 0
    %p147 = por %p145, %p146
    %p148 = scmp.ne.s32.totalorder %s134, %s135
    %p149 = scmp.eq.s32.totalorder %s17, 1
    %p150 = por %p148, %p149
    %p152 = scmp.ne.s32.totalorder %s135, %s151
    %p153 = scmp.eq.s32.totalorder %s17, 0
    %p154 = por %p152, %p153
    %p155 = scmp.le.s32.totalorder 1, %s11
    %p156 = scmp.lt.s32.totalorder %s11, 3
    %p157 = pnand %p155, %p156
    %p158 = pneg %p157
    // Predicated region
    $region9: #{conv_block_forward.1} parent=5 // pred_check
      _
    $region10: #{conv_block_forward.1} parent=5 // pred_check_branch
      %160 = sbr.rel (%p157) target = $region12
    $region11: #{conv_block_forward.1} parent=5 // pred_region
      %s161 = ssub.s32 %s11, 1
      // Predicated region
      $region13: #{conv_block_forward.1} parent=11 // pred_check
        %p162 = pneg %p58
      $region14: #{conv_block_forward.1} parent=11 // pred_check_branch
        %164 = sbr.rel (%p162) target = $region16
      $region15: #{conv_block_forward.1} parent=11 // pred_region
        _
      $region16: #{conv_block_forward.1} parent=11 // pred_fallthru
        _
      // Predicated region
      $region17: #{conv_block_forward.1} parent=11 // pred_check
        %p165 = pneg %p79
      $region18: #{conv_block_forward.1} parent=11 // pred_check_branch
        %167 = sbr.rel (%p165) target = $region20
      $region19: #{conv_block_forward.1} parent=11 // pred_region
        _
      $region20: #{conv_block_forward.1} parent=11 // pred_fallthru
        _
      // Predicated region
      $region21: #{conv_block_forward.1} parent=11 // pred_check
        %p168 = pneg %p100
      $region22: #{conv_block_forward.1} parent=11 // pred_check_branch
        %170 = sbr.rel (%p168) target = $region24
      $region23: #{conv_block_forward.1} parent=11 // pred_region
        _
      $region24: #{conv_block_forward.1} parent=11 // pred_fallthru
        _
      // Predicated region
      $region25: #{conv_block_forward.1} parent=11 // pred_check
        %p171 = pneg %p121
      $region26: #{conv_block_forward.1} parent=11 // pred_check_branch
        %173 = sbr.rel (%p171) target = $region28
      $region27: #{conv_block_forward.1} parent=11 // pred_region
        _
      $region28: #{conv_block_forward.1} parent=11 // pred_fallthru
        _
    $region12: #{conv_block_forward.1} parent=5 // pred_fallthru
      _
    %p174 = scmp.lt.s32.totalorder %s11, 2
    // Predicated region
    $region29: #{conv_block_forward.1} parent=5 // pred_check
      %p175 = pneg %p174
    $region30: #{conv_block_forward.1} parent=5 // pred_check_branch
      %177 = sbr.rel (%p175) target = $region32
    $region31: #{conv_block_forward.1} parent=5 // pred_region
      // Predicated region
      $region33: #{conv_block_forward.1} parent=31 // pred_check
        %p178 = pneg %p31
      $region34: #{conv_block_forward.1} parent=31 // pred_check_branch
        %180 = sbr.rel (%p178) target = $region36
      $region35: #{conv_block_forward.1} parent=31 // pred_region
        %p181 = scmp.lt.s32.totalorder %s11, 1
        %s182 = scalar_select %p181, %s11, 1
        %s183 = smul.addr %s182, 32
        %s184 = smul.addr %s183, 4
        %s185 = scalar_lea.vmem %s0, %s184
      $region36: #{conv_block_forward.1} parent=31 // pred_fallthru
        _
    $region32: #{conv_block_forward.1} parent=5 // pred_fallthru
      _
    %p186 = scmp.le.s32.totalorder 1, %s11
    %p187 = scmp.lt.s32.totalorder %s11, 3
    %p188 = pnand %p186, %p187
    %p189 = pneg %p188
    // Predicated region
    $region37: #{conv_block_forward.1} parent=5 // pred_check
      _
    $region38: #{conv_block_forward.1} parent=5 // pred_check_branch
      %191 = sbr.rel (%p188) target = $region40
    $region39: #{conv_block_forward.1} parent=5 // pred_region
      %s192 = ssub.s32 %s11, 1
      %p193 = scmp.lt.s32.totalorder %s16, 1
      %s194 = scalar_select %p193, %s16, 1
      %s195 = smul.addr %s194, 32
      %s196 = smul.addr %s195, 4
      %s197 = scalar_lea.vmem %s0, %s196
      %p198 = pneg %p37
      %p199 = pneg %p34
      %p200 = pneg %p58
      %p201 = pneg %p55
      %p202 = pneg %p79
      %p203 = pneg %p76
      %p204 = pneg %p100
      %p205 = pneg %p97
      %p206 = pneg %p121
      %p207 = pneg %p118
      %p208 = pneg %p147
      %p209 = pneg %p144
      %p210 = scmp.lt.s32.totalorder %s16, 1
      %s211 = scalar_select %p210, %s16, 1
      %s212 = smul.addr %s211, 32
      %s213 = smul.addr %s212, 4
      %s214 = scalar_lea.vmem %s5, %s213
      %p215 = scmp.lt.s32.totalorder %s16, 1
      %s216 = scalar_select %p215, %s16, 1
      %s217 = smul.addr %s216, 32
      %s218 = smul.addr %s217, 4
      %s219 = scalar_lea.vmem %s0, %s218
      %p220 = scmp.lt.s32.totalorder %s16, 1
      %s221 = scalar_select %p220, %s16, 1
      %s222 = smul.addr %s221, 32
      %s223 = smul.addr %s222, 4
      %s224 = scalar_lea.vmem %s5, %s223
      %225 = vst [vmem:[#allocation2] sm:$0xff] 0.0
      %226 = vst [vmem:[#allocation2 + $0x8] sm:$0xff] 0.0
      %227 = vst [vmem:[#allocation2 + $0x10] sm:$0xff] 0.0
      %s228 = scalar_lea.vmem [#allocation2], 408
      %229 = vst [vmem:[%s228] sm:$0xff] 0.0
      %230 = vst [vmem:[%s228 + $0x8] sm:$0xff] 0.0
      %231 = vst [vmem:[%s228 + $0x10] sm:$0xff] 0.0
      %232 = vst [vmem:[#allocation2 + $0x10] sm:$0xff] 0.0
      %233 = vst [vmem:[#allocation2 + $0x28] sm:$0xff] 0.0
      %234 = vst [vmem:[#allocation2 + $0x40] sm:$0xff] 0.0
      %235 = vst [vmem:[#allocation2 + $0x58] sm:$0xff] 0.0
      %236 = vst [vmem:[#allocation2 + $0x70] sm:$0xff] 0.0
      %237 = vst [vmem:[#allocation2 + $0x88] sm:$0xff] 0.0
      %238 = vst [vmem:[#allocation2 + $0xa0] sm:$0xff] 0.0
      %239 = vst [vmem:[#allocation2 + $0xb8] sm:$0xff] 0.0
      %240 = vst [vmem:[#allocation2 + $0xd0] sm:$0xff] 0.0
      %241 = vst [vmem:[#allocation2 + $0xe8] sm:$0xff] 0.0
      %242 = vst [vmem:[#allocation2 + $0x100] sm:$0xff] 0.0
      %243 = vst [vmem:[#allocation2 + $0x118] sm:$0xff] 0.0
      %244 = vst [vmem:[#allocation2 + $0x130] sm:$0xff] 0.0
      %245 = vst [vmem:[#allocation2 + $0x148] sm:$0xff] 0.0
      %246 = vst [vmem:[#allocation2 + $0x160] sm:$0xff] 0.0
      %247 = vst [vmem:[#allocation2 + $0x178] sm:$0xff] 0.0
      %248 = vst [vmem:[#allocation2 + $0x190] sm:$0xff] 0.0
      %249 = vst [vmem:[#allocation2 + $0x1a8] sm:$0xff] 0.0
      %v250 = vld [vmem:[%s219] sm:$0xf]
      %v251 = vld [vmem:[%s219 + $0x4] sm:$0xf]
      %v252 = vld [vmem:[%s219 + $0x8] sm:$0xf]
      %v253 = vld [vmem:[%s219 + $0xc] sm:$0xf]
      %v254 = vld [vmem:[%s219 + $0x10] sm:$0xf]
      %v255 = vld [vmem:[%s219 + $0x14] sm:$0xf]
      %v256 = vld [vmem:[%s219 + $0x18] sm:$0xf]
      %v257 = vld [vmem:[%s219 + $0x1c] sm:$0xf]
      %v258 = vld [vmem:[%s219 + $0x20] sm:$0xf]
      %v259 = vld [vmem:[%s219 + $0x24] sm:$0xf]
      %v260 = vld [vmem:[%s219 + $0x28] sm:$0xf]
      %v261 = vld [vmem:[%s219 + $0x2c] sm:$0xf]
      %v262 = vld [vmem:[%s219 + $0x30] sm:$0xf]
      %v263 = vld [vmem:[%s219 + $0x34] sm:$0xf]
      %v264 = vld [vmem:[%s219 + $0x38] sm:$0xf]
      %v265 = vld [vmem:[%s219 + $0x3c] sm:$0xf]
      %v266 = vld [vmem:[%s219 + $0x40] sm:$0xf]
      %v267 = vld [vmem:[%s219 + $0x44] sm:$0xf]
      %v268 = vld [vmem:[%s219 + $0x48] sm:$0xf]
      %v269 = vld [vmem:[%s219 + $0x4c] sm:$0xf]
      %v270 = vld [vmem:[%s219 + $0x50] sm:$0xf]
      %v271 = vld [vmem:[%s219 + $0x54] sm:$0xf]
      %v272 = vld [vmem:[%s219 + $0x58] sm:$0xf]
      %v273 = vld [vmem:[%s219 + $0x5c] sm:$0xf]
      %v274 = vld [vmem:[%s219 + $0x60] sm:$0xf]
      %v275 = vld [vmem:[%s219 + $0x64] sm:$0xf]
      %v276 = vld [vmem:[%s219 + $0x68] sm:$0xf]
      %v277 = vld [vmem:[%s219 + $0x6c] sm:$0xf]
      %v278 = vld [vmem:[%s219 + $0x70] sm:$0xf]
      %v279 = vld [vmem:[%s219 + $0x74] sm:$0xf]
      %v280 = vld [vmem:[%s219 + $0x78] sm:$0xf]
      %v281 = vld [vmem:[%s219 + $0x7c] sm:$0xf]
      %v282 = vld [vmem:[%s1] sm:$0xf]
      %v283 = vld [vmem:[%s1 + $0x4] sm:$0xf]
      %v284 = vld [vmem:[%s1 + $0x8] sm:$0xf]
      %v285 = vld [vmem:[%s1 + $0xc] sm:$0xf]
      %v286 = vld [vmem:[%s1 + $0x10] sm:$0xf]
      %v287 = vld [vmem:[%s1 + $0x14] sm:$0xf]
      %v288 = vld [vmem:[%s1 + $0x18] sm:$0xf]
      %v289 = vld [vmem:[%s1 + $0x1c] sm:$0xf]
      %v290 = vld [vmem:[%s1 + $0x20] sm:$0xf]
      %v291 = vld [vmem:[%s1 + $0x24] sm:$0xf]
      %v292 = vld [vmem:[%s1 + $0x28] sm:$0xf]
      %v293 = vld [vmem:[%s1 + $0x2c] sm:$0xf]
      %v294 = vld [vmem:[%s1 + $0x30] sm:$0xf]
      %v295 = vld [vmem:[%s1 + $0x34] sm:$0xf]
      %v296 = vld [vmem:[%s1 + $0x38] sm:$0xf]
      %v297 = vld [vmem:[%s1 + $0x3c] sm:$0xf]
      %v298 = vld [vmem:[%s3] sm:$0x1]
      %v300 = vperm.slane %v298, 0
      %v334 = vunpack.c.l.b16 %v250
      %v335 = vunpack.c.l.b16 %v251
      %v336 = vunpack.c.l.b16 %v252
      %v337 = vunpack.c.l.b16 %v253
      %v338 = vunpack.c.l.b16 %v254
      %v339 = vunpack.c.l.b16 %v255
      %v340 = vunpack.c.l.b16 %v256
      %v341 = vunpack.c.l.b16 %v257
      %v342 = vunpack.c.l.b16 %v258
      %v343 = vunpack.c.l.b16 %v259
      %v344 = vunpack.c.l.b16 %v260
      %v345 = vunpack.c.l.b16 %v261
      %v346 = vunpack.c.l.b16 %v262
      %v347 = vunpack.c.l.b16 %v263
      %v348 = vunpack.c.l.b16 %v264
      %v349 = vunpack.c.l.b16 %v265
      %v350 = vunpack.c.l.b16 %v266
      %v351 = vunpack.c.l.b16 %v267
      %v352 = vunpack.c.l.b16 %v268
      %v353 = vunpack.c.l.b16 %v269
      %v354 = vunpack.c.l.b16 %v270
      %v355 = vunpack.c.l.b16 %v271
      %v356 = vunpack.c.l.b16 %v272
      %v357 = vunpack.c.l.b16 %v273
      %v358 = vunpack.c.l.b16 %v274
      %v359 = vunpack.c.l.b16 %v275
      %v360 = vunpack.c.l.b16 %v276
      %v361 = vunpack.c.l.b16 %v277
      %v362 = vunpack.c.l.b16 %v278
      %v363 = vunpack.c.l.b16 %v279
      %v364 = vunpack.c.l.b16 %v280
      %v365 = vunpack.c.l.b16 %v281
      %v366 = vpack.c.b16 %v335, %v334
      %v367 = vpack.c.b16 %v337, %v336
      %v368 = vpack.c.b16 %v339, %v338
      %v369 = vpack.c.b16 %v341, %v340
      %v370 = vpack.c.b16 %v343, %v342
      %v371 = vpack.c.b16 %v345, %v344
      %v372 = vpack.c.b16 %v347, %v346
      %v373 = vpack.c.b16 %v349, %v348
      %v374 = vpack.c.b16 %v351, %v350
      %v375 = vpack.c.b16 %v353, %v352
      %v376 = vpack.c.b16 %v355, %v354
      %v377 = vpack.c.b16 %v357, %v356
      %v378 = vpack.c.b16 %v359, %v358
      %v379 = vpack.c.b16 %v361, %v360
      %v380 = vpack.c.b16 %v363, %v362
      %v381 = vpack.c.b16 %v365, %v364
      %v414 = vunpack.c.l.b16 %v282
      %v415 = vunpack.c.l.b16 %v283
      %v416 = vunpack.c.l.b16 %v284
      %v417 = vunpack.c.l.b16 %v285
      %v418 = vunpack.c.l.b16 %v286
      %v419 = vunpack.c.l.b16 %v287
      %v420 = vunpack.c.l.b16 %v288
      %v421 = vunpack.c.l.b16 %v289
      %v422 = vunpack.c.l.b16 %v290
      %v423 = vunpack.c.l.b16 %v291
      %v424 = vunpack.c.l.b16 %v292
      %v425 = vunpack.c.l.b16 %v293
      %v426 = vunpack.c.l.b16 %v294
      %v427 = vunpack.c.l.b16 %v295
      %v428 = vunpack.c.l.b16 %v296
      %v429 = vunpack.c.l.b16 %v297
      %v430 = vpack.c.b16 %v415, %v414
      %v431 = vpack.c.b16 %v417, %v416
      %v432 = vpack.c.b16 %v419, %v418
      %v433 = vpack.c.b16 %v421, %v420
      %v434 = vpack.c.b16 %v423, %v422
      %v435 = vpack.c.b16 %v425, %v424
      %v436 = vpack.c.b16 %v427, %v426
      %v437 = vpack.c.b16 %v429, %v428
      %446 = vmatpush.bf16.msra.mxu0 %v437
      %447 = vmatpush.bf16.msra.mxu0 %v436
      %448 = vmatpush.bf16.msra.mxu0 %v435
      %449 = vmatpush.bf16.msra.mxu0 %v434
      %450 = vmatpush.bf16.msra.mxu0 %v433
      %451 = vmatpush.bf16.msra.mxu0 %v432
      %452 = vmatpush.bf16.msra.mxu0 %v431
      %453 = vmatpush.bf16.msra.mxu0 %v430
      %454 = vmatmul.bf16.gmra.mxu0 %v366
      %v455 = vpop.f32.mrf.mxu0
      %v456 = vadd.f32 %v300, %v455
      %v457 = vpop.f32.mrf.mxu0
      %v458 = vadd.f32 %v300, %v457
      %459 = vmatmul.bf16.gmra.mxu0 %v367
      %v460 = vpop.f32.mrf.mxu0
      %v461 = vadd.f32 %v300, %v460
      %v462 = vpop.f32.mrf.mxu0
      %v463 = vadd.f32 %v300, %v462
      %464 = vmatmul.bf16.gmra.mxu0 %v368
      %v465 = vpop.f32.mrf.mxu0
      %v466 = vadd.f32 %v300, %v465
      %v467 = vpop.f32.mrf.mxu0
      %v468 = vadd.f32 %v300, %v467
      %469 = vmatmul.bf16.gmra.mxu0 %v369
      %v470 = vpop.f32.mrf.mxu0
      %v471 = vadd.f32 %v300, %v470
      %v472 = vpop.f32.mrf.mxu0
      %v473 = vadd.f32 %v300, %v472
      %474 = vmatmul.bf16.gmra.mxu0 %v370
      %v475 = vpop.f32.mrf.mxu0
      %v476 = vadd.f32 %v300, %v475
      %v477 = vpop.f32.mrf.mxu0
      %v478 = vadd.f32 %v300, %v477
      %479 = vmatmul.bf16.gmra.mxu0 %v371
      %v480 = vpop.f32.mrf.mxu0
      %v481 = vadd.f32 %v300, %v480
      %v482 = vpop.f32.mrf.mxu0
      %v483 = vadd.f32 %v300, %v482
      %484 = vmatmul.bf16.gmra.mxu0 %v372
      %v485 = vpop.f32.mrf.mxu0
      %v486 = vadd.f32 %v300, %v485
      %v487 = vpop.f32.mrf.mxu0
      %v488 = vadd.f32 %v300, %v487
      %489 = vmatmul.bf16.gmra.mxu0 %v373
      %v490 = vpop.f32.mrf.mxu0
      %v491 = vadd.f32 %v300, %v490
      %v492 = vpop.f32.mrf.mxu0
      %v493 = vadd.f32 %v300, %v492
      %494 = vmatmul.bf16.gmra.mxu0 %v374
      %v495 = vpop.f32.mrf.mxu0
      %v496 = vadd.f32 %v300, %v495
      %v497 = vpop.f32.mrf.mxu0
      %v498 = vadd.f32 %v300, %v497
      %499 = vmatmul.bf16.gmra.mxu0 %v375
      %v500 = vpop.f32.mrf.mxu0
      %v501 = vadd.f32 %v300, %v500
      %v502 = vpop.f32.mrf.mxu0
      %v503 = vadd.f32 %v300, %v502
      %504 = vmatmul.bf16.gmra.mxu0 %v376
      %v505 = vpop.f32.mrf.mxu0
      %v506 = vadd.f32 %v300, %v505
      %v507 = vpop.f32.mrf.mxu0
      %v508 = vadd.f32 %v300, %v507
      %509 = vmatmul.bf16.gmra.mxu0 %v377
      %v510 = vpop.f32.mrf.mxu0
      %v511 = vadd.f32 %v300, %v510
      %v512 = vpop.f32.mrf.mxu0
      %v513 = vadd.f32 %v300, %v512
      %514 = vmatmul.bf16.gmra.mxu0 %v378
      %v515 = vpop.f32.mrf.mxu0
      %v516 = vadd.f32 %v300, %v515
      %v517 = vpop.f32.mrf.mxu0
      %v518 = vadd.f32 %v300, %v517
      %519 = vmatmul.bf16.gmra.mxu0 %v379
      %v520 = vpop.f32.mrf.mxu0
      %v521 = vadd.f32 %v300, %v520
      %v522 = vpop.f32.mrf.mxu0
      %v523 = vadd.f32 %v300, %v522
      %524 = vmatmul.bf16.gmra.mxu0 %v380
      %v525 = vpop.f32.mrf.mxu0
      %v526 = vadd.f32 %v300, %v525
      %v527 = vpop.f32.mrf.mxu0
      %v528 = vadd.f32 %v300, %v527
      %529 = vmatmul.bf16.gmra.mxu0 %v381
      %v530 = vpop.f32.mrf.mxu0
      %v531 = vadd.f32 %v300, %v530
      %v532 = vpop.f32.mrf.mxu0
      %v533 = vadd.f32 %v300, %v532
      %534 = vdwg.mxu0
      %v535 = vmax.f32 %v456, 0.0
      %v536 = vmax.f32 %v458, 0.0
      %v537 = vmax.f32 %v461, 0.0
      %v538 = vmax.f32 %v463, 0.0
      %v539 = vmax.f32 %v466, 0.0
      %v540 = vmax.f32 %v468, 0.0
      %v541 = vmax.f32 %v471, 0.0
      %v542 = vmax.f32 %v473, 0.0
      %v543 = vmax.f32 %v476, 0.0
      %v544 = vmax.f32 %v478, 0.0
      %v545 = vmax.f32 %v481, 0.0
      %v546 = vmax.f32 %v483, 0.0
      %v547 = vmax.f32 %v486, 0.0
      %v548 = vmax.f32 %v488, 0.0
      %v549 = vmax.f32 %v491, 0.0
      %v550 = vmax.f32 %v493, 0.0
      %v551 = vmax.f32 %v496, 0.0
      %v552 = vmax.f32 %v498, 0.0
      %v553 = vmax.f32 %v501, 0.0
      %v554 = vmax.f32 %v503, 0.0
      %v555 = vmax.f32 %v506, 0.0
      %v556 = vmax.f32 %v508, 0.0
      %v557 = vmax.f32 %v511, 0.0
      %v558 = vmax.f32 %v513, 0.0
      %v559 = vmax.f32 %v516, 0.0
      %v560 = vmax.f32 %v518, 0.0
      %v561 = vmax.f32 %v521, 0.0
      %v562 = vmax.f32 %v523, 0.0
      %v563 = vmax.f32 %v526, 0.0
      %v564 = vmax.f32 %v528, 0.0
      %v565 = vmax.f32 %v531, 0.0
      %v566 = vmax.f32 %v533, 0.0
      %s567 = scalar_lea.vmem [#allocation2], 24
      %568 = vst [vmem:[%s567] sm:$0xff] %v535
      %569 = vst [vmem:[%s567 + $0x8] sm:$0xff] %v536
      %570 = vst [vmem:[%s567 + $0x18] sm:$0xff] %v537
      %571 = vst [vmem:[%s567 + $0x20] sm:$0xff] %v538
      %572 = vst [vmem:[%s567 + $0x30] sm:$0xff] %v539
      %573 = vst [vmem:[%s567 + $0x38] sm:$0xff] %v540
      %574 = vst [vmem:[%s567 + $0x48] sm:$0xff] %v541
      %575 = vst [vmem:[%s567 + $0x50] sm:$0xff] %v542
      %576 = vst [vmem:[%s567 + $0x60] sm:$0xff] %v543
      %577 = vst [vmem:[%s567 + $0x68] sm:$0xff] %v544
      %578 = vst [vmem:[%s567 + $0x78] sm:$0xff] %v545
      %579 = vst [vmem:[%s567 + $0x80] sm:$0xff] %v546
      %580 = vst [vmem:[%s567 + $0x90] sm:$0xff] %v547
      %581 = vst [vmem:[%s567 + $0x98] sm:$0xff] %v548
      %582 = vst [vmem:[%s567 + $0xa8] sm:$0xff] %v549
      %583 = vst [vmem:[%s567 + $0xb0] sm:$0xff] %v550
      %584 = vst [vmem:[%s567 + $0xc0] sm:$0xff] %v551
      %585 = vst [vmem:[%s567 + $0xc8] sm:$0xff] %v552
      %586 = vst [vmem:[%s567 + $0xd8] sm:$0xff] %v553
      %587 = vst [vmem:[%s567 + $0xe0] sm:$0xff] %v554
      %588 = vst [vmem:[%s567 + $0xf0] sm:$0xff] %v555
      %589 = vst [vmem:[%s567 + $0xf8] sm:$0xff] %v556
      %590 = vst [vmem:[%s567 + $0x108] sm:$0xff] %v557
      %591 = vst [vmem:[%s567 + $0x110] sm:$0xff] %v558
      %592 = vst [vmem:[%s567 + $0x120] sm:$0xff] %v559
      %593 = vst [vmem:[%s567 + $0x128] sm:$0xff] %v560
      %594 = vst [vmem:[%s567 + $0x138] sm:$0xff] %v561
      %595 = vst [vmem:[%s567 + $0x140] sm:$0xff] %v562
      %596 = vst [vmem:[%s567 + $0x150] sm:$0xff] %v563
      %597 = vst [vmem:[%s567 + $0x158] sm:$0xff] %v564
      %598 = vst [vmem:[%s567 + $0x168] sm:$0xff] %v565
      %599 = vst [vmem:[%s567 + $0x170] sm:$0xff] %v566
      %v600 = vld [vmem:[#allocation2] sm:$0xff]
      %v601 = vld [vmem:[#allocation2 + $0x8] sm:$0xff]
      %v602 = vld [vmem:[#allocation2 + $0x10] sm:$0xff]
      %v603 = vld [vmem:[#allocation2 + $0x18] sm:$0xff]
      %v604 = vld [vmem:[#allocation2 + $0x20] sm:$0xff]
      %v605 = vld [vmem:[#allocation2 + $0x28] sm:$0xff]
      %v606 = vld [vmem:[#allocation2 + $0x30] sm:$0xff]
      %v607 = vld [vmem:[#allocation2 + $0x38] sm:$0xff]
      %v608 = vld [vmem:[#allocation2 + $0x40] sm:$0xff]
      %v609 = vld [vmem:[#allocation2 + $0x48] sm:$0xff]
      %v610 = vld [vmem:[#allocation2 + $0x50] sm:$0xff]
      %v611 = vld [vmem:[#allocation2 + $0x58] sm:$0xff]
      %v612 = vld [vmem:[#allocation2 + $0x60] sm:$0xff]
      %v613 = vld [vmem:[#allocation2 + $0x68] sm:$0xff]
      %v614 = vld [vmem:[#allocation2 + $0x70] sm:$0xff]
      %v615 = vld [vmem:[#allocation2 + $0x78] sm:$0xff]
      %v616 = vld [vmem:[#allocation2 + $0x80] sm:$0xff]
      %v617 = vld [vmem:[#allocation2 + $0x88] sm:$0xff]
      %v618 = vld [vmem:[#allocation2 + $0x90] sm:$0xff]
      %v619 = vld [vmem:[#allocation2 + $0x98] sm:$0xff]
      %v620 = vld [vmem:[#allocation2 + $0xa0] sm:$0xff]
      %v621 = vld [vmem:[#allocation2 + $0xa8] sm:$0xff]
      %v622 = vld [vmem:[#allocation2 + $0xb0] sm:$0xff]
      %v623 = vld [vmem:[#allocation2 + $0xb8] sm:$0xff]
      %v624 = vld [vmem:[#allocation2 + $0xc0] sm:$0xff]
      %v625 = vld [vmem:[#allocation2 + $0xc8] sm:$0xff]
      %v626 = vld [vmem:[#allocation2 + $0xd0] sm:$0xff]
      %v627 = vld [vmem:[#allocation2 + $0xd8] sm:$0xff]
      %v628 = vld [vmem:[#allocation2 + $0xe0] sm:$0xff]
      %v629 = vld [vmem:[#allocation2 + $0xe8] sm:$0xff]
      %v630 = vld [vmem:[#allocation2 + $0xf0] sm:$0xff]
      %v631 = vld [vmem:[#allocation2 + $0xf8] sm:$0xff]
      %v632 = vld [vmem:[#allocation2 + $0x100] sm:$0xff]
      %v633 = vld [vmem:[#allocation2 + $0x108] sm:$0xff]
      %v634 = vld [vmem:[#allocation2 + $0x110] sm:$0xff]
      %v635 = vld [vmem:[#allocation2 + $0x118] sm:$0xff]
      %v636 = vld [vmem:[#allocation2 + $0x120] sm:$0xff]
      %v637 = vld [vmem:[#allocation2 + $0x128] sm:$0xff]
      %v638 = vld [vmem:[#allocation2 + $0x130] sm:$0xff]
      %v639 = vld [vmem:[#allocation2 + $0x138] sm:$0xff]
      %v640 = vld [vmem:[#allocation2 + $0x140] sm:$0xff]
      %v641 = vld [vmem:[#allocation2 + $0x148] sm:$0xff]
      %v642 = vld [vmem:[#allocation2 + $0x150] sm:$0xff]
      %v643 = vld [vmem:[#allocation2 + $0x158] sm:$0xff]
      %v644 = vld [vmem:[#allocation2 + $0x160] sm:$0xff]
      %v645 = vld [vmem:[#allocation2 + $0x168] sm:$0xff]
      %v646 = vld [vmem:[#allocation2 + $0x170] sm:$0xff]
      %v647 = vld [vmem:[#allocation2 + $0x178] sm:$0xff]
      %v648 = vld [vmem:[#allocation2 + $0x180] sm:$0xff]
      %v649 = vld [vmem:[#allocation2 + $0x188] sm:$0xff]
      %v650 = vld [vmem:[#allocation2 + $0x190] sm:$0xff]
      %v651 = vld [vmem:[#allocation2 + $0x198] sm:$0xff]
      %v652 = vld [vmem:[#allocation2 + $0x1a0] sm:$0xff]
      %v653 = vld [vmem:[#allocation2 + $0x1a8] sm:$0xff]
      %v654 = vrot.slane %v600, 7
      %v655 = vrot.slane %v601, 7
      %v656 = vrot.slane %v602, 7
      %v657 = vrot.slane %v603, 7
      %v658 = vrot.slane %v604, 7
      %v659 = vrot.slane %v605, 7
      %v660 = vrot.slane %v606, 7
      %v661 = vrot.slane %v607, 7
      %v662 = vrot.slane %v608, 7
      %v663 = vrot.slane %v609, 7
      %v664 = vrot.slane %v610, 7
      %v665 = vrot.slane %v611, 7
      %v666 = vrot.slane %v612, 7
      %v667 = vrot.slane %v613, 7
      %v668 = vrot.slane %v614, 7
      %v669 = vrot.slane %v615, 7
      %v670 = vrot.slane %v616, 7
      %v671 = vrot.slane %v617, 7
      %v672 = vrot.slane %v618, 7
      %v673 = vrot.slane %v619, 7
      %v674 = vrot.slane %v620, 7
      %v675 = vrot.slane %v621, 7
      %v676 = vrot.slane %v622, 7
      %v677 = vrot.slane %v623, 7
      %v678 = vrot.slane %v624, 7
      %v679 = vrot.slane %v625, 7
      %v680 = vrot.slane %v626, 7
      %v681 = vrot.slane %v627, 7
      %v682 = vrot.slane %v628, 7
      %v683 = vrot.slane %v629, 7
      %v684 = vrot.slane %v630, 7
      %v685 = vrot.slane %v631, 7
      %v686 = vrot.slane %v632, 7
      %v687 = vrot.slane %v633, 7
      %v688 = vrot.slane %v634, 7
      %v689 = vrot.slane %v635, 7
      %v690 = vrot.slane %v636, 7
      %v691 = vrot.slane %v637, 7
      %v692 = vrot.slane %v638, 7
      %v693 = vrot.slane %v639, 7
      %v694 = vrot.slane %v640, 7
      %v695 = vrot.slane %v641, 7
      %v696 = vrot.slane %v642, 7
      %v697 = vrot.slane %v643, 7
      %v698 = vrot.slane %v644, 7
      %v699 = vrot.slane %v645, 7
      %v700 = vrot.slane %v646, 7
      %v701 = vrot.slane %v647, 7
      %v702 = vrot.slane %v648, 7
      %v703 = vrot.slane %v649, 7
      %v704 = vrot.slane %v650, 7
      %v705 = vrot.slane %v651, 7
      %v706 = vrot.slane %v652, 7
      %v707 = vrot.slane %v653, 7
      %v708 = vlaneseq
      %v709 = vshrl.u32 %v708, 7
      %vm710 = vcmp.lt.s32.totalorder %v709, 1
      %v711 = vsel %vm710, %v706, %v707
      %v712 = vsel %vm710, %v705, %v706
      %v713 = vsel %vm710, %v704, %v705
      %v714 = vsel %vm710, %v703, %v704
      %v715 = vsel %vm710, %v702, %v703
      %v716 = vsel %vm710, %v701, %v702
      %v717 = vsel %vm710, %v700, %v701
      %v718 = vsel %vm710, %v699, %v700
      %v719 = vsel %vm710, %v698, %v699
      %v720 = vsel %vm710, %v697, %v698
      %v721 = vsel %vm710, %v696, %v697
      %v722 = vsel %vm710, %v695, %v696
      %v723 = vsel %vm710, %v694, %v695
      %v724 = vsel %vm710, %v693, %v694
      %v725 = vsel %vm710, %v692, %v693
      %v726 = vsel %vm710, %v691, %v692
      %v727 = vsel %vm710, %v690, %v691
      %v728 = vsel %vm710, %v689, %v690
      %v729 = vsel %vm710, %v688, %v689
      %v730 = vsel %vm710, %v687, %v688
      %v731 = vsel %vm710, %v686, %v687
      %v732 = vsel %vm710, %v685, %v686
      %v733 = vsel %vm710, %v684, %v685
      %v734 = vsel %vm710, %v683, %v684
      %v735 = vsel %vm710, %v682, %v683
      %v736 = vsel %vm710, %v681, %v682
      %v737 = vsel %vm710, %v680, %v681
      %v738 = vsel %vm710, %v679, %v680
      %v739 = vsel %vm710, %v678, %v679
      %v740 = vsel %vm710, %v677, %v678
      %v741 = vsel %vm710, %v676, %v677
      %v742 = vsel %vm710, %v675, %v676
      %v743 = vsel %vm710, %v674, %v675
      %v744 = vsel %vm710, %v673, %v674
      %v745 = vsel %vm710, %v672, %v673
      %v746 = vsel %vm710, %v671, %v672
      %v747 = vsel %vm710, %v670, %v671
      %v748 = vsel %vm710, %v669, %v670
      %v749 = vsel %vm710, %v668, %v669
      %v750 = vsel %vm710, %v667, %v668
      %v751 = vsel %vm710, %v666, %v667
      %v752 = vsel %vm710, %v665, %v666
      %v753 = vsel %vm710, %v664, %v665
      %v754 = vsel %vm710, %v663, %v664
      %v755 = vsel %vm710, %v662, %v663
      %v756 = vsel %vm710, %v661, %v662
      %v757 = vsel %vm710, %v660, %v661
      %v758 = vsel %vm710, %v659, %v660
      %v759 = vsel %vm710, %v658, %v659
      %v760 = vsel %vm710, %v657, %v658
      %v761 = vsel %vm710, %v656, %v657
      %v762 = vsel %vm710, %v655, %v656
      %v763 = vsel %vm710, %v654, %v655
      %v764 = vsel %vm710, %v707, %v654
      %v765 = vrot.slane %v600, 1
      %v766 = vrot.slane %v601, 1
      %v767 = vrot.slane %v602, 1
      %v768 = vrot.slane %v603, 1
      %v769 = vrot.slane %v604, 1
      %v770 = vrot.slane %v605, 1
      %v771 = vrot.slane %v606, 1
      %v772 = vrot.slane %v607, 1
      %v773 = vrot.slane %v608, 1
      %v774 = vrot.slane %v609, 1
      %v775 = vrot.slane %v610, 1
      %v776 = vrot.slane %v611, 1
      %v777 = vrot.slane %v612, 1
      %v778 = vrot.slane %v613, 1
      %v779 = vrot.slane %v614, 1
      %v780 = vrot.slane %v615, 1
      %v781 = vrot.slane %v616, 1
      %v782 = vrot.slane %v617, 1
      %v783 = vrot.slane %v618, 1
      %v784 = vrot.slane %v619, 1
      %v785 = vrot.slane %v620, 1
      %v786 = vrot.slane %v621, 1
      %v787 = vrot.slane %v622, 1
      %v788 = vrot.slane %v623, 1
      %v789 = vrot.slane %v624, 1
      %v790 = vrot.slane %v625, 1
      %v791 = vrot.slane %v626, 1
      %v792 = vrot.slane %v627, 1
      %v793 = vrot.slane %v628, 1
      %v794 = vrot.slane %v629, 1
      %v795 = vrot.slane %v630, 1
      %v796 = vrot.slane %v631, 1
      %v797 = vrot.slane %v632, 1
      %v798 = vrot.slane %v633, 1
      %v799 = vrot.slane %v634, 1
      %v800 = vrot.slane %v635, 1
      %v801 = vrot.slane %v636, 1
      %v802 = vrot.slane %v637, 1
      %v803 = vrot.slane %v638, 1
      %v804 = vrot.slane %v639, 1
      %v805 = vrot.slane %v640, 1
      %v806 = vrot.slane %v641, 1
      %v807 = vrot.slane %v642, 1
      %v808 = vrot.slane %v643, 1
      %v809 = vrot.slane %v644, 1
      %v810 = vrot.slane %v645, 1
      %v811 = vrot.slane %v646, 1
      %v812 = vrot.slane %v647, 1
      %v813 = vrot.slane %v648, 1
      %v814 = vrot.slane %v649, 1
      %v815 = vrot.slane %v650, 1
      %v816 = vrot.slane %v651, 1
      %v817 = vrot.slane %v652, 1
      %v818 = vrot.slane %v653, 1
      %vm819 = vcmp.lt.s32.totalorder %v709, 7
      %v820 = vsel %vm819, %v817, %v818
      %v821 = vsel %vm819, %v816, %v817
      %v822 = vsel %vm819, %v815, %v816
      %v823 = vsel %vm819, %v814, %v815
      %v824 = vsel %vm819, %v813, %v814
      %v825 = vsel %vm819, %v812, %v813
      %v826 = vsel %vm819, %v811, %v812
      %v827 = vsel %vm819, %v810, %v811
      %v828 = vsel %vm819, %v809, %v810
      %v829 = vsel %vm819, %v808, %v809
      %v830 = vsel %vm819, %v807, %v808
      %v831 = vsel %vm819, %v806, %v807
      %v832 = vsel %vm819, %v805, %v806
      %v833 = vsel %vm819, %v804, %v805
      %v834 = vsel %vm819, %v803, %v804
      %v835 = vsel %vm819, %v802, %v803
      %v836 = vsel %vm819, %v801, %v802
      %v837 = vsel %vm819, %v800, %v801
      %v838 = vsel %vm819, %v799, %v800
      %v839 = vsel %vm819, %v798, %v799
      %v840 = vsel %vm819, %v797, %v798
      %v841 = vsel %vm819, %v796, %v797
      %v842 = vsel %vm819, %v795, %v796
      %v843 = vsel %vm819, %v794, %v795
      %v844 = vsel %vm819, %v793, %v794
      %v845 = vsel %vm819, %v792, %v793
      %v846 = vsel %vm819, %v791, %v792
      %v847 = vsel %vm819, %v790, %v791
      %v848 = vsel %vm819, %v789, %v790
      %v849 = vsel %vm819, %v788, %v789
      %v850 = vsel %vm819, %v787, %v788
      %v851 = vsel %vm819, %v786, %v787
      %v852 = vsel %vm819, %v785, %v786
      %v853 = vsel %vm819, %v784, %v785
      %v854 = vsel %vm819, %v783, %v784
      %v855 = vsel %vm819, %v782, %v783
      %v856 = vsel %vm819, %v781, %v782
      %v857 = vsel %vm819, %v780, %v781
      %v858 = vsel %vm819, %v779, %v780
      %v859 = vsel %vm819, %v778, %v779
      %v860 = vsel %vm819, %v777, %v778
      %v861 = vsel %vm819, %v776, %v777
      %v862 = vsel %vm819, %v775, %v776
      %v863 = vsel %vm819, %v774, %v775
      %v864 = vsel %vm819, %v773, %v774
      %v865 = vsel %vm819, %v772, %v773
      %v866 = vsel %vm819, %v771, %v772
      %v867 = vsel %vm819, %v770, %v771
      %v868 = vsel %vm819, %v769, %v770
      %v869 = vsel %vm819, %v768, %v769
      %v870 = vsel %vm819, %v767, %v768
      %v871 = vsel %vm819, %v766, %v767
      %v872 = vsel %vm819, %v765, %v766
      %v873 = vsel %vm819, %v818, %v765
      %v874 = vpack.c.bf16 %v763, %v764
      %v875 = vpack.c.bf16 %v761, %v762
      %v876 = vpack.c.bf16 %v759, %v760
      %v877 = vpack.c.bf16 %v757, %v758
      %v878 = vpack.c.bf16 %v755, %v756
      %v879 = vpack.c.bf16 %v753, %v754
      %v880 = vpack.c.bf16 %v751, %v752
      %v881 = vpack.c.bf16 %v749, %v750
      %v882 = vpack.c.bf16 %v747, %v748
      %v883 = vpack.c.bf16 %v745, %v746
      %v884 = vpack.c.bf16 %v743, %v744
      %v885 = vpack.c.bf16 %v741, %v742
      %v886 = vpack.c.bf16 %v739, %v740
      %v887 = vpack.c.bf16 %v737, %v738
      %v888 = vpack.c.bf16 %v735, %v736
      %v889 = vpack.c.bf16 %v733, %v734
      %v890 = vpack.c.bf16 %v731, %v732
      %v891 = vpack.c.bf16 %v729, %v730
      %v892 = vpack.c.bf16 %v727, %v728
      %v893 = vpack.c.bf16 %v725, %v726
      %v894 = vpack.c.bf16 %v723, %v724
      %v895 = vpack.c.bf16 %v721, %v722
      %v896 = vpack.c.bf16 %v719, %v720
      %v897 = vpack.c.bf16 %v717, %v718
      %v898 = vld [vmem:[%s2] sm:$0xf]
      %v899 = vld [vmem:[%s2 + $0x4] sm:$0xf]
      %v900 = vld [vmem:[%s2 + $0x8] sm:$0xf]
      %v901 = vld [vmem:[%s2 + $0xc] sm:$0xf]
      %v902 = vld [vmem:[%s2 + $0x10] sm:$0xf]
      %v903 = vld [vmem:[%s2 + $0x14] sm:$0xf]
      %v904 = vld [vmem:[%s2 + $0x18] sm:$0xf]
      %v905 = vld [vmem:[%s2 + $0x1c] sm:$0xf]
      %v906 = vld [vmem:[%s2 + $0x20] sm:$0xf]
      %v907 = vld [vmem:[%s2 + $0x24] sm:$0xf]
      %v908 = vld [vmem:[%s2 + $0x28] sm:$0xf]
      %v909 = vld [vmem:[%s2 + $0x2c] sm:$0xf]
      %v910 = vld [vmem:[%s2 + $0x30] sm:$0xf]
      %v911 = vld [vmem:[%s2 + $0x34] sm:$0xf]
      %v912 = vld [vmem:[%s2 + $0x38] sm:$0xf]
      %v913 = vld [vmem:[%s2 + $0x3c] sm:$0xf]
      %v914 = vpack.c.bf16 %v601, %v600
      %v915 = vpack.c.bf16 %v603, %v602
      %v916 = vpack.c.bf16 %v605, %v604
      %v917 = vpack.c.bf16 %v607, %v606
      %v918 = vpack.c.bf16 %v609, %v608
      %v919 = vpack.c.bf16 %v611, %v610
      %v920 = vpack.c.bf16 %v613, %v612
      %v921 = vpack.c.bf16 %v615, %v614
      %v922 = vpack.c.bf16 %v617, %v616
      %v923 = vpack.c.bf16 %v619, %v618
      %v924 = vpack.c.bf16 %v621, %v620
      %v925 = vpack.c.bf16 %v623, %v622
      %v926 = vpack.c.bf16 %v625, %v624
      %v927 = vpack.c.bf16 %v627, %v626
      %v928 = vpack.c.bf16 %v629, %v628
      %v929 = vpack.c.bf16 %v631, %v630
      %v930 = vpack.c.bf16 %v633, %v632
      %v931 = vpack.c.bf16 %v635, %v634
      %v932 = vpack.c.bf16 %v637, %v636
      %v933 = vpack.c.bf16 %v639, %v638
      %v934 = vpack.c.bf16 %v641, %v640
      %v935 = vpack.c.bf16 %v643, %v642
      %v936 = vpack.c.bf16 %v645, %v644
      %v937 = vpack.c.bf16 %v647, %v646
      %s938 = scalar_lea.vmem %s2, 64
      %v939 = vld [vmem:[%s938] sm:$0xf]
      %v940 = vld [vmem:[%s938 + $0x4] sm:$0xf]
      %v941 = vld [vmem:[%s938 + $0x8] sm:$0xf]
      %v942 = vld [vmem:[%s938 + $0xc] sm:$0xf]
      %v943 = vld [vmem:[%s938 + $0x10] sm:$0xf]
      %v944 = vld [vmem:[%s938 + $0x14] sm:$0xf]
      %v945 = vld [vmem:[%s938 + $0x18] sm:$0xf]
      %v946 = vld [vmem:[%s938 + $0x1c] sm:$0xf]
      %v947 = vld [vmem:[%s938 + $0x20] sm:$0xf]
      %v948 = vld [vmem:[%s938 + $0x24] sm:$0xf]
      %v949 = vld [vmem:[%s938 + $0x28] sm:$0xf]
      %v950 = vld [vmem:[%s938 + $0x2c] sm:$0xf]
      %v951 = vld [vmem:[%s938 + $0x30] sm:$0xf]
      %v952 = vld [vmem:[%s938 + $0x34] sm:$0xf]
      %v953 = vld [vmem:[%s938 + $0x38] sm:$0xf]
      %v954 = vld [vmem:[%s938 + $0x3c] sm:$0xf]
      %v971 = vunpack.c.l.b16 %v939
      %v972 = vunpack.c.l.b16 %v940
      %v973 = vunpack.c.l.b16 %v941
      %v974 = vunpack.c.l.b16 %v942
      %v975 = vunpack.c.l.b16 %v943
      %v976 = vunpack.c.l.b16 %v944
      %v977 = vunpack.c.l.b16 %v945
      %v978 = vunpack.c.l.b16 %v946
      %v979 = vunpack.c.l.b16 %v947
      %v980 = vunpack.c.l.b16 %v948
      %v981 = vunpack.c.l.b16 %v949
      %v982 = vunpack.c.l.b16 %v950
      %v983 = vunpack.c.l.b16 %v951
      %v984 = vunpack.c.l.b16 %v952
      %v985 = vunpack.c.l.b16 %v953
      %v986 = vunpack.c.l.b16 %v954
      %v987 = vpack.c.b16 %v972, %v971
      %v988 = vpack.c.b16 %v974, %v973
      %v989 = vpack.c.b16 %v976, %v975
      %v990 = vpack.c.b16 %v978, %v977
      %v991 = vpack.c.b16 %v980, %v979
      %v992 = vpack.c.b16 %v982, %v981
      %v993 = vpack.c.b16 %v984, %v983
      %v994 = vpack.c.b16 %v986, %v985
      %1003 = vmatpush.bf16.msra.mxu0 %v994
      %1004 = vmatpush.bf16.msra.mxu0 %v993
      %1005 = vmatpush.bf16.msra.mxu0 %v992
      %1006 = vmatpush.bf16.msra.mxu0 %v991
      %1007 = vmatpush.bf16.msra.mxu0 %v990
      %1008 = vmatpush.bf16.msra.mxu0 %v989
      %1009 = vmatpush.bf16.msra.mxu0 %v988
      %1010 = vmatpush.bf16.msra.mxu0 %v987
      %1011 = vmatmul.bf16.gmra.mxu0 %v914
      %v1012 = vpop.f32.mrf.mxu0
      %v1013 = vadd.f32 0.0, %v1012
      %v1014 = vpop.f32.mrf.mxu0
      %v1015 = vadd.f32 0.0, %v1014
      %1016 = vmatmul.bf16.gmra.mxu0 %v915
      %v1017 = vpop.f32.mrf.mxu0
      %v1018 = vpop.f32.mrf.mxu0
      %v1019 = vadd.f32 0.0, %v1018
      %1020 = vmatmul.bf16.gmra.mxu0 %v916
      %v1021 = vpop.f32.mrf.mxu0
      %v1022 = vadd.f32 0.0, %v1021
      %v1023 = vpop.f32.mrf.mxu0
      %1024 = vmatmul.bf16.gmra.mxu0 %v917
      %v1025 = vpop.f32.mrf.mxu0
      %v1026 = vadd.f32 0.0, %v1025
      %v1027 = vpop.f32.mrf.mxu0
      %v1028 = vadd.f32 0.0, %v1027
      %1029 = vmatmul.bf16.gmra.mxu0 %v918
      %v1030 = vpop.f32.mrf.mxu0
      %v1031 = vpop.f32.mrf.mxu0
      %v1032 = vadd.f32 0.0, %v1031
      %1033 = vmatmul.bf16.gmra.mxu0 %v919
      %v1034 = vpop.f32.mrf.mxu0
      %v1035 = vadd.f32 0.0, %v1034
      %v1036 = vpop.f32.mrf.mxu0
      %1037 = vmatmul.bf16.gmra.mxu0 %v920
      %v1038 = vpop.f32.mrf.mxu0
      %v1039 = vadd.f32 0.0, %v1038
      %v1040 = vpop.f32.mrf.mxu0
      %v1041 = vadd.f32 0.0, %v1040
      %1042 = vmatmul.bf16.gmra.mxu0 %v921
      %v1043 = vpop.f32.mrf.mxu0
      %v1044 = vpop.f32.mrf.mxu0
      %v1045 = vadd.f32 0.0, %v1044
      %1046 = vmatmul.bf16.gmra.mxu0 %v922
      %v1047 = vpop.f32.mrf.mxu0
      %v1048 = vadd.f32 0.0, %v1047
      %v1049 = vpop.f32.mrf.mxu0
      %1050 = vmatmul.bf16.gmra.mxu0 %v923
      %v1051 = vpop.f32.mrf.mxu0
      %v1052 = vadd.f32 0.0, %v1051
      %v1053 = vpop.f32.mrf.mxu0
      %v1054 = vadd.f32 0.0, %v1053
      %1055 = vmatmul.bf16.gmra.mxu0 %v924
      %v1056 = vpop.f32.mrf.mxu0
      %v1057 = vpop.f32.mrf.mxu0
      %v1058 = vadd.f32 0.0, %v1057
      %1059 = vmatmul.bf16.gmra.mxu0 %v925
      %v1060 = vpop.f32.mrf.mxu0
      %v1061 = vadd.f32 0.0, %v1060
      %v1062 = vpop.f32.mrf.mxu0
      %1063 = vmatmul.bf16.gmra.mxu0 %v926
      %v1064 = vpop.f32.mrf.mxu0
      %v1065 = vadd.f32 0.0, %v1064
      %v1066 = vpop.f32.mrf.mxu0
      %v1067 = vadd.f32 0.0, %v1066
      %1068 = vmatmul.bf16.gmra.mxu0 %v927
      %v1069 = vpop.f32.mrf.mxu0
      %v1070 = vpop.f32.mrf.mxu0
      %v1071 = vadd.f32 0.0, %v1070
      %1072 = vmatmul.bf16.gmra.mxu0 %v928
      %v1073 = vpop.f32.mrf.mxu0
      %v1074 = vadd.f32 0.0, %v1073
      %v1075 = vpop.f32.mrf.mxu0
      %1076 = vmatmul.bf16.gmra.mxu0 %v929
      %v1077 = vpop.f32.mrf.mxu0
      %v1078 = vadd.f32 0.0, %v1077
      %v1079 = vpop.f32.mrf.mxu0
      %v1080 = vadd.f32 0.0, %v1079
      %1081 = vmatmul.bf16.gmra.mxu0 %v930
      %v1082 = vpop.f32.mrf.mxu0
      %v1083 = vpop.f32.mrf.mxu0
      %v1084 = vadd.f32 0.0, %v1083
      %1085 = vmatmul.bf16.gmra.mxu0 %v931
      %v1086 = vpop.f32.mrf.mxu0
      %v1087 = vadd.f32 0.0, %v1086
      %v1088 = vpop.f32.mrf.mxu0
      %1089 = vmatmul.bf16.gmra.mxu0 %v932
      %v1090 = vpop.f32.mrf.mxu0
      %v1091 = vadd.f32 0.0, %v1090
      %v1092 = vpop.f32.mrf.mxu0
      %v1093 = vadd.f32 0.0, %v1092
      %1094 = vmatmul.bf16.gmra.mxu0 %v933
      %v1095 = vpop.f32.mrf.mxu0
      %v1096 = vpop.f32.mrf.mxu0
      %v1097 = vadd.f32 0.0, %v1096
      %1098 = vmatmul.bf16.gmra.mxu0 %v934
      %v1099 = vpop.f32.mrf.mxu0
      %v1100 = vadd.f32 0.0, %v1099
      %v1101 = vpop.f32.mrf.mxu0
      %1102 = vmatmul.bf16.gmra.mxu0 %v935
      %v1103 = vpop.f32.mrf.mxu0
      %v1104 = vadd.f32 0.0, %v1103
      %v1105 = vpop.f32.mrf.mxu0
      %v1106 = vadd.f32 0.0, %v1105
      %1107 = vmatmul.bf16.gmra.mxu0 %v936
      %v1108 = vpop.f32.mrf.mxu0
      %v1109 = vpop.f32.mrf.mxu0
      %v1110 = vadd.f32 0.0, %v1109
      %1111 = vmatmul.bf16.gmra.mxu0 %v937
      %v1112 = vpop.f32.mrf.mxu0
      %v1113 = vadd.f32 0.0, %v1112
      %v1114 = vpop.f32.mrf.mxu0
      %1115 = vdwg.mxu0
      %v1132 = vunpack.c.l.b16 %v898
      %v1133 = vunpack.c.l.b16 %v899
      %v1134 = vunpack.c.l.b16 %v900
      %v1135 = vunpack.c.l.b16 %v901
      %v1136 = vunpack.c.l.b16 %v902
      %v1137 = vunpack.c.l.b16 %v903
      %v1138 = vunpack.c.l.b16 %v904
      %v1139 = vunpack.c.l.b16 %v905
      %v1140 = vunpack.c.l.b16 %v906
      %v1141 = vunpack.c.l.b16 %v907
      %v1142 = vunpack.c.l.b16 %v908
      %v1143 = vunpack.c.l.b16 %v909
      %v1144 = vunpack.c.l.b16 %v910
      %v1145 = vunpack.c.l.b16 %v911
      %v1146 = vunpack.c.l.b16 %v912
      %v1147 = vunpack.c.l.b16 %v913
      %v1148 = vpack.c.b16 %v1133, %v1132
      %v1149 = vpack.c.b16 %v1135, %v1134
      %v1150 = vpack.c.b16 %v1137, %v1136
      %v1151 = vpack.c.b16 %v1139, %v1138
      %v1152 = vpack.c.b16 %v1141, %v1140
      %v1153 = vpack.c.b16 %v1143, %v1142
      %v1154 = vpack.c.b16 %v1145, %v1144
      %v1155 = vpack.c.b16 %v1147, %v1146
      %1164 = vmatpush.bf16.msra.mxu0 %v1155
      %1165 = vmatpush.bf16.msra.mxu0 %v1154
      %1166 = vmatpush.bf16.msra.mxu0 %v1153
      %1167 = vmatpush.bf16.msra.mxu0 %v1152
      %1168 = vmatpush.bf16.msra.mxu0 %v1151
      %1169 = vmatpush.bf16.msra.mxu0 %v1150
      %1170 = vmatpush.bf16.msra.mxu0 %v1149
      %1171 = vmatpush.bf16.msra.mxu0 %v1148
      %1172 = vmatmul.bf16.gmra.mxu0 %v874
      %v1173 = vpop.f32.mrf.mxu0
      %v1174 = vadd.f32 %v1013, %v1173
      %v1175 = vpop.f32.mrf.mxu0
      %v1176 = vadd.f32 %v1015, %v1175
      %1177 = vmatmul.bf16.gmra.mxu0 %v875
      %v1178 = vpop.f32.mrf.mxu0
      %v1179 = vpop.f32.mrf.mxu0
      %v1180 = vadd.f32 %v1019, %v1179
      %1181 = vmatmul.bf16.gmra.mxu0 %v876
      %v1182 = vpop.f32.mrf.mxu0
      %v1183 = vadd.f32 %v1022, %v1182
      %v1184 = vpop.f32.mrf.mxu0
      %1185 = vmatmul.bf16.gmra.mxu0 %v877
      %v1186 = vpop.f32.mrf.mxu0
      %v1187 = vadd.f32 %v1026, %v1186
      %v1188 = vpop.f32.mrf.mxu0
      %v1189 = vadd.f32 %v1028, %v1188
      %1190 = vmatmul.bf16.gmra.mxu0 %v878
      %v1191 = vpop.f32.mrf.mxu0
      %v1192 = vpop.f32.mrf.mxu0
      %v1193 = vadd.f32 %v1032, %v1192
      %1194 = vmatmul.bf16.gmra.mxu0 %v879
      %v1195 = vpop.f32.mrf.mxu0
      %v1196 = vadd.f32 %v1035, %v1195
      %v1197 = vpop.f32.mrf.mxu0
      %1198 = vmatmul.bf16.gmra.mxu0 %v880
      %v1199 = vpop.f32.mrf.mxu0
      %v1200 = vadd.f32 %v1039, %v1199
      %v1201 = vpop.f32.mrf.mxu0
      %v1202 = vadd.f32 %v1041, %v1201
      %1203 = vmatmul.bf16.gmra.mxu0 %v881
      %v1204 = vpop.f32.mrf.mxu0
      %v1205 = vpop.f32.mrf.mxu0
      %v1206 = vadd.f32 %v1045, %v1205
      %1207 = vmatmul.bf16.gmra.mxu0 %v882
      %v1208 = vpop.f32.mrf.mxu0
      %v1209 = vadd.f32 %v1048, %v1208
      %v1210 = vpop.f32.mrf.mxu0
      %1211 = vmatmul.bf16.gmra.mxu0 %v883
      %v1212 = vpop.f32.mrf.mxu0
      %v1213 = vadd.f32 %v1052, %v1212
      %v1214 = vpop.f32.mrf.mxu0
      %v1215 = vadd.f32 %v1054, %v1214
      %1216 = vmatmul.bf16.gmra.mxu0 %v884
      %v1217 = vpop.f32.mrf.mxu0
      %v1218 = vpop.f32.mrf.mxu0
      %v1219 = vadd.f32 %v1058, %v1218
      %1220 = vmatmul.bf16.gmra.mxu0 %v885
      %v1221 = vpop.f32.mrf.mxu0
      %v1222 = vadd.f32 %v1061, %v1221
      %v1223 = vpop.f32.mrf.mxu0
      %1224 = vmatmul.bf16.gmra.mxu0 %v886
      %v1225 = vpop.f32.mrf.mxu0
      %v1226 = vadd.f32 %v1065, %v1225
      %v1227 = vpop.f32.mrf.mxu0
      %v1228 = vadd.f32 %v1067, %v1227
      %1229 = vmatmul.bf16.gmra.mxu0 %v887
      %v1230 = vpop.f32.mrf.mxu0
      %v1231 = vpop.f32.mrf.mxu0
      %v1232 = vadd.f32 %v1071, %v1231
      %1233 = vmatmul.bf16.gmra.mxu0 %v888
      %v1234 = vpop.f32.mrf.mxu0
      %v1235 = vadd.f32 %v1074, %v1234
      %v1236 = vpop.f32.mrf.mxu0
      %1237 = vmatmul.bf16.gmra.mxu0 %v889
      %v1238 = vpop.f32.mrf.mxu0
      %v1239 = vadd.f32 %v1078, %v1238
      %v1240 = vpop.f32.mrf.mxu0
      %v1241 = vadd.f32 %v1080, %v1240
      %1242 = vmatmul.bf16.gmra.mxu0 %v890
      %v1243 = vpop.f32.mrf.mxu0
      %v1244 = vpop.f32.mrf.mxu0
      %v1245 = vadd.f32 %v1084, %v1244
      %1246 = vmatmul.bf16.gmra.mxu0 %v891
      %v1247 = vpop.f32.mrf.mxu0
      %v1248 = vadd.f32 %v1087, %v1247
      %v1249 = vpop.f32.mrf.mxu0
      %1250 = vmatmul.bf16.gmra.mxu0 %v892
      %v1251 = vpop.f32.mrf.mxu0
      %v1252 = vadd.f32 %v1091, %v1251
      %v1253 = vpop.f32.mrf.mxu0
      %v1254 = vadd.f32 %v1093, %v1253
      %1255 = vmatmul.bf16.gmra.mxu0 %v893
      %v1256 = vpop.f32.mrf.mxu0
      %v1257 = vpop.f32.mrf.mxu0
      %v1258 = vadd.f32 %v1097, %v1257
      %1259 = vmatmul.bf16.gmra.mxu0 %v894
      %v1260 = vpop.f32.mrf.mxu0
      %v1261 = vadd.f32 %v1100, %v1260
      %v1262 = vpop.f32.mrf.mxu0
      %1263 = vmatmul.bf16.gmra.mxu0 %v895
      %v1264 = vpop.f32.mrf.mxu0
      %v1265 = vadd.f32 %v1104, %v1264
      %v1266 = vpop.f32.mrf.mxu0
      %v1267 = vadd.f32 %v1106, %v1266
      %1268 = vmatmul.bf16.gmra.mxu0 %v896
      %v1269 = vpop.f32.mrf.mxu0
      %v1270 = vpop.f32.mrf.mxu0
      %v1271 = vadd.f32 %v1110, %v1270
      %1272 = vmatmul.bf16.gmra.mxu0 %v897
      %v1273 = vpop.f32.mrf.mxu0
      %v1274 = vadd.f32 %v1113, %v1273
      %v1275 = vpop.f32.mrf.mxu0
      %1276 = vdwg.mxu0
      %v1277 = vpack.c.bf16 %v871, %v872
      %v1278 = vpack.c.bf16 %v869, %v870
      %v1279 = vpack.c.bf16 %v867, %v868
      %v1280 = vpack.c.bf16 %v865, %v866
      %v1281 = vpack.c.bf16 %v863, %v864
      %v1282 = vpack.c.bf16 %v861, %v862
      %v1283 = vpack.c.bf16 %v859, %v860
      %v1284 = vpack.c.bf16 %v857, %v858
      %v1285 = vpack.c.bf16 %v855, %v856
      %v1286 = vpack.c.bf16 %v853, %v854
      %v1287 = vpack.c.bf16 %v851, %v852
      %v1288 = vpack.c.bf16 %v849, %v850
      %v1289 = vpack.c.bf16 %v847, %v848
      %v1290 = vpack.c.bf16 %v845, %v846
      %v1291 = vpack.c.bf16 %v843, %v844
      %v1292 = vpack.c.bf16 %v841, %v842
      %v1293 = vpack.c.bf16 %v839, %v840
      %v1294 = vpack.c.bf16 %v837, %v838
      %v1295 = vpack.c.bf16 %v835, %v836
      %v1296 = vpack.c.bf16 %v833, %v834
      %v1297 = vpack.c.bf16 %v831, %v832
      %v1298 = vpack.c.bf16 %v829, %v830
      %v1299 = vpack.c.bf16 %v827, %v828
      %v1300 = vpack.c.bf16 %v825, %v826
      %s1301 = scalar_lea.vmem %s2, 128
      %v1302 = vld [vmem:[%s1301] sm:$0xf]
      %v1303 = vld [vmem:[%s1301 + $0x4] sm:$0xf]
      %v1304 = vld [vmem:[%s1301 + $0x8] sm:$0xf]
      %v1305 = vld [vmem:[%s1301 + $0xc] sm:$0xf]
      %v1306 = vld [vmem:[%s1301 + $0x10] sm:$0xf]
      %v1307 = vld [vmem:[%s1301 + $0x14] sm:$0xf]
      %v1308 = vld [vmem:[%s1301 + $0x18] sm:$0xf]
      %v1309 = vld [vmem:[%s1301 + $0x1c] sm:$0xf]
      %v1310 = vld [vmem:[%s1301 + $0x20] sm:$0xf]
      %v1311 = vld [vmem:[%s1301 + $0x24] sm:$0xf]
      %v1312 = vld [vmem:[%s1301 + $0x28] sm:$0xf]
      %v1313 = vld [vmem:[%s1301 + $0x2c] sm:$0xf]
      %v1314 = vld [vmem:[%s1301 + $0x30] sm:$0xf]
      %v1315 = vld [vmem:[%s1301 + $0x34] sm:$0xf]
      %v1316 = vld [vmem:[%s1301 + $0x38] sm:$0xf]
      %v1317 = vld [vmem:[%s1301 + $0x3c] sm:$0xf]
      %v1334 = vunpack.c.l.b16 %v1302
      %v1335 = vunpack.c.l.b16 %v1303
      %v1336 = vunpack.c.l.b16 %v1304
      %v1337 = vunpack.c.l.b16 %v1305
      %v1338 = vunpack.c.l.b16 %v1306
      %v1339 = vunpack.c.l.b16 %v1307
      %v1340 = vunpack.c.l.b16 %v1308
      %v1341 = vunpack.c.l.b16 %v1309
      %v1342 = vunpack.c.l.b16 %v1310
      %v1343 = vunpack.c.l.b16 %v1311
      %v1344 = vunpack.c.l.b16 %v1312
      %v1345 = vunpack.c.l.b16 %v1313
      %v1346 = vunpack.c.l.b16 %v1314
      %v1347 = vunpack.c.l.b16 %v1315
      %v1348 = vunpack.c.l.b16 %v1316
      %v1349 = vunpack.c.l.b16 %v1317
      %v1350 = vpack.c.b16 %v1335, %v1334
      %v1351 = vpack.c.b16 %v1337, %v1336
      %v1352 = vpack.c.b16 %v1339, %v1338
      %v1353 = vpack.c.b16 %v1341, %v1340
      %v1354 = vpack.c.b16 %v1343, %v1342
      %v1355 = vpack.c.b16 %v1345, %v1344
      %v1356 = vpack.c.b16 %v1347, %v1346
      %v1357 = vpack.c.b16 %v1349, %v1348
      %1366 = vmatpush.bf16.msra.mxu0 %v1357
      %1367 = vmatpush.bf16.msra.mxu0 %v1356
      %1368 = vmatpush.bf16.msra.mxu0 %v1355
      %1369 = vmatpush.bf16.msra.mxu0 %v1354
      %1370 = vmatpush.bf16.msra.mxu0 %v1353
      %1371 = vmatpush.bf16.msra.mxu0 %v1352
      %1372 = vmatpush.bf16.msra.mxu0 %v1351
      %1373 = vmatpush.bf16.msra.mxu0 %v1350
      %1374 = vmatmul.bf16.gmra.mxu0 %v1277
      %v1375 = vpop.f32.mrf.mxu0
      %v1376 = vadd.f32 0.0, %v1375
      %v1377 = vpop.f32.mrf.mxu0
      %v1378 = vadd.f32 0.0, %v1377
      %1379 = vmatmul.bf16.gmra.mxu0 %v1278
      %v1380 = vpop.f32.mrf.mxu0
      %v1381 = vpop.f32.mrf.mxu0
      %v1382 = vadd.f32 0.0, %v1381
      %1383 = vmatmul.bf16.gmra.mxu0 %v1279
      %v1384 = vpop.f32.mrf.mxu0
      %v1385 = vadd.f32 0.0, %v1384
      %v1386 = vpop.f32.mrf.mxu0
      %1387 = vmatmul.bf16.gmra.mxu0 %v1280
      %v1388 = vpop.f32.mrf.mxu0
      %v1389 = vadd.f32 0.0, %v1388
      %v1390 = vpop.f32.mrf.mxu0
      %v1391 = vadd.f32 0.0, %v1390
      %1392 = vmatmul.bf16.gmra.mxu0 %v1281
      %v1393 = vpop.f32.mrf.mxu0
      %v1394 = vpop.f32.mrf.mxu0
      %v1395 = vadd.f32 0.0, %v1394
      %1396 = vmatmul.bf16.gmra.mxu0 %v1282
      %v1397 = vpop.f32.mrf.mxu0
      %v1398 = vadd.f32 0.0, %v1397
      %v1399 = vpop.f32.mrf.mxu0
      %1400 = vmatmul.bf16.gmra.mxu0 %v1283
      %v1401 = vpop.f32.mrf.mxu0
      %v1402 = vadd.f32 0.0, %v1401
      %v1403 = vpop.f32.mrf.mxu0
      %v1404 = vadd.f32 0.0, %v1403
      %1405 = vmatmul.bf16.gmra.mxu0 %v1284
      %v1406 = vpop.f32.mrf.mxu0
      %v1407 = vpop.f32.mrf.mxu0
      %v1408 = vadd.f32 0.0, %v1407
      %1409 = vmatmul.bf16.gmra.mxu0 %v1285
      %v1410 = vpop.f32.mrf.mxu0
      %v1411 = vadd.f32 0.0, %v1410
      %v1412 = vpop.f32.mrf.mxu0
      %1413 = vmatmul.bf16.gmra.mxu0 %v1286
      %v1414 = vpop.f32.mrf.mxu0
      %v1415 = vadd.f32 0.0, %v1414
      %v1416 = vpop.f32.mrf.mxu0
      %v1417 = vadd.f32 0.0, %v1416
      %1418 = vmatmul.bf16.gmra.mxu0 %v1287
      %v1419 = vpop.f32.mrf.mxu0
      %v1420 = vpop.f32.mrf.mxu0
      %v1421 = vadd.f32 0.0, %v1420
      %1422 = vmatmul.bf16.gmra.mxu0 %v1288
      %v1423 = vpop.f32.mrf.mxu0
      %v1424 = vadd.f32 0.0, %v1423
      %v1425 = vpop.f32.mrf.mxu0
      %1426 = vmatmul.bf16.gmra.mxu0 %v1289
      %v1427 = vpop.f32.mrf.mxu0
      %v1428 = vadd.f32 0.0, %v1427
      %v1429 = vpop.f32.mrf.mxu0
      %v1430 = vadd.f32 0.0, %v1429
      %1431 = vmatmul.bf16.gmra.mxu0 %v1290
      %v1432 = vpop.f32.mrf.mxu0
      %v1433 = vpop.f32.mrf.mxu0
      %v1434 = vadd.f32 0.0, %v1433
      %1435 = vmatmul.bf16.gmra.mxu0 %v1291
      %v1436 = vpop.f32.mrf.mxu0
      %v1437 = vadd.f32 0.0, %v1436
      %v1438 = vpop.f32.mrf.mxu0
      %1439 = vmatmul.bf16.gmra.mxu0 %v1292
      %v1440 = vpop.f32.mrf.mxu0
      %v1441 = vadd.f32 0.0, %v1440
      %v1442 = vpop.f32.mrf.mxu0
      %v1443 = vadd.f32 0.0, %v1442
      %1444 = vmatmul.bf16.gmra.mxu0 %v1293
      %v1445 = vpop.f32.mrf.mxu0
      %v1446 = vpop.f32.mrf.mxu0
      %v1447 = vadd.f32 0.0, %v1446
      %1448 = vmatmul.bf16.gmra.mxu0 %v1294
      %v1449 = vpop.f32.mrf.mxu0
      %v1450 = vadd.f32 0.0, %v1449
      %v1451 = vpop.f32.mrf.mxu0
      %1452 = vmatmul.bf16.gmra.mxu0 %v1295
      %v1453 = vpop.f32.mrf.mxu0
      %v1454 = vadd.f32 0.0, %v1453
      %v1455 = vpop.f32.mrf.mxu0
      %v1456 = vadd.f32 0.0, %v1455
      %1457 = vmatmul.bf16.gmra.mxu0 %v1296
      %v1458 = vpop.f32.mrf.mxu0
      %v1459 = vpop.f32.mrf.mxu0
      %v1460 = vadd.f32 0.0, %v1459
      %1461 = vmatmul.bf16.gmra.mxu0 %v1297
      %v1462 = vpop.f32.mrf.mxu0
      %v1463 = vadd.f32 0.0, %v1462
      %v1464 = vpop.f32.mrf.mxu0
      %1465 = vmatmul.bf16.gmra.mxu0 %v1298
      %v1466 = vpop.f32.mrf.mxu0
      %v1467 = vadd.f32 0.0, %v1466
      %v1468 = vpop.f32.mrf.mxu0
      %v1469 = vadd.f32 0.0, %v1468
      %1470 = vmatmul.bf16.gmra.mxu0 %v1299
      %v1471 = vpop.f32.mrf.mxu0
      %v1472 = vpop.f32.mrf.mxu0
      %v1473 = vadd.f32 0.0, %v1472
      %1474 = vmatmul.bf16.gmra.mxu0 %v1300
      %v1475 = vpop.f32.mrf.mxu0
      %v1476 = vadd.f32 0.0, %v1475
      %v1477 = vpop.f32.mrf.mxu0
      %1478 = vdwg.mxu0
      %v1479 = vadd.f32 %v1174, %v1376
      %v1480 = vadd.f32 %v1176, %v1378
      %v1481 = vadd.f32 %v1180, %v1382
      %v1482 = vadd.f32 %v1183, %v1385
      %v1483 = vadd.f32 %v1187, %v1389
      %v1484 = vadd.f32 %v1189, %v1391
      %v1485 = vadd.f32 %v1193, %v1395
      %v1486 = vadd.f32 %v1196, %v1398
      %v1487 = vadd.f32 %v1200, %v1402
      %v1488 = vadd.f32 %v1202, %v1404
      %v1489 = vadd.f32 %v1206, %v1408
      %v1490 = vadd.f32 %v1209, %v1411
      %v1491 = vadd.f32 %v1213, %v1415
      %v1492 = vadd.f32 %v1215, %v1417
      %v1493 = vadd.f32 %v1219, %v1421
      %v1494 = vadd.f32 %v1222, %v1424
      %v1495 = vadd.f32 %v1226, %v1428
      %v1496 = vadd.f32 %v1228, %v1430
      %v1497 = vadd.f32 %v1232, %v1434
      %v1498 = vadd.f32 %v1235, %v1437
      %v1499 = vadd.f32 %v1239, %v1441
      %v1500 = vadd.f32 %v1241, %v1443
      %v1501 = vadd.f32 %v1245, %v1447
      %v1502 = vadd.f32 %v1248, %v1450
      %v1503 = vadd.f32 %v1252, %v1454
      %v1504 = vadd.f32 %v1254, %v1456
      %v1505 = vadd.f32 %v1258, %v1460
      %v1506 = vadd.f32 %v1261, %v1463
      %v1507 = vadd.f32 %v1265, %v1467
      %v1508 = vadd.f32 %v1267, %v1469
      %v1509 = vadd.f32 %v1271, %v1473
      %v1510 = vadd.f32 %v1274, %v1476
      %v1511 = vpack.c.bf16 %v760, %v761
      %v1512 = vpack.c.bf16 %v758, %v759
      %v1513 = vpack.c.bf16 %v756, %v757
      %v1514 = vpack.c.bf16 %v754, %v755
      %v1515 = vpack.c.bf16 %v752, %v753
      %v1516 = vpack.c.bf16 %v750, %v751
      %v1517 = vpack.c.bf16 %v748, %v749
      %v1518 = vpack.c.bf16 %v746, %v747
      %v1519 = vpack.c.bf16 %v744, %v745
      %v1520 = vpack.c.bf16 %v742, %v743
      %v1521 = vpack.c.bf16 %v740, %v741
      %v1522 = vpack.c.bf16 %v738, %v739
      %v1523 = vpack.c.bf16 %v736, %v737
      %v1524 = vpack.c.bf16 %v734, %v735
      %v1525 = vpack.c.bf16 %v732, %v733
      %v1526 = vpack.c.bf16 %v730, %v731
      %v1527 = vpack.c.bf16 %v728, %v729
      %v1528 = vpack.c.bf16 %v726, %v727
      %v1529 = vpack.c.bf16 %v724, %v725
      %v1530 = vpack.c.bf16 %v722, %v723
      %v1531 = vpack.c.bf16 %v720, %v721
      %v1532 = vpack.c.bf16 %v718, %v719
      %v1533 = vpack.c.bf16 %v716, %v717
      %v1534 = vpack.c.bf16 %v714, %v715
      %s1535 = scalar_lea.vmem %s2, 192
      %v1536 = vld [vmem:[%s1535] sm:$0xf]
      %v1537 = vld [vmem:[%s1535 + $0x4] sm:$0xf]
      %v1538 = vld [vmem:[%s1535 + $0x8] sm:$0xf]
      %v1539 = vld [vmem:[%s1535 + $0xc] sm:$0xf]
      %v1540 = vld [vmem:[%s1535 + $0x10] sm:$0xf]
      %v1541 = vld [vmem:[%s1535 + $0x14] sm:$0xf]
      %v1542 = vld [vmem:[%s1535 + $0x18] sm:$0xf]
      %v1543 = vld [vmem:[%s1535 + $0x1c] sm:$0xf]
      %v1544 = vld [vmem:[%s1535 + $0x20] sm:$0xf]
      %v1545 = vld [vmem:[%s1535 + $0x24] sm:$0xf]
      %v1546 = vld [vmem:[%s1535 + $0x28] sm:$0xf]
      %v1547 = vld [vmem:[%s1535 + $0x2c] sm:$0xf]
      %v1548 = vld [vmem:[%s1535 + $0x30] sm:$0xf]
      %v1549 = vld [vmem:[%s1535 + $0x34] sm:$0xf]
      %v1550 = vld [vmem:[%s1535 + $0x38] sm:$0xf]
      %v1551 = vld [vmem:[%s1535 + $0x3c] sm:$0xf]
      %v1568 = vunpack.c.l.b16 %v1536
      %v1569 = vunpack.c.l.b16 %v1537
      %v1570 = vunpack.c.l.b16 %v1538
      %v1571 = vunpack.c.l.b16 %v1539
      %v1572 = vunpack.c.l.b16 %v1540
      %v1573 = vunpack.c.l.b16 %v1541
      %v1574 = vunpack.c.l.b16 %v1542
      %v1575 = vunpack.c.l.b16 %v1543
      %v1576 = vunpack.c.l.b16 %v1544
      %v1577 = vunpack.c.l.b16 %v1545
      %v1578 = vunpack.c.l.b16 %v1546
      %v1579 = vunpack.c.l.b16 %v1547
      %v1580 = vunpack.c.l.b16 %v1548
      %v1581 = vunpack.c.l.b16 %v1549
      %v1582 = vunpack.c.l.b16 %v1550
      %v1583 = vunpack.c.l.b16 %v1551
      %v1584 = vpack.c.b16 %v1569, %v1568
      %v1585 = vpack.c.b16 %v1571, %v1570
      %v1586 = vpack.c.b16 %v1573, %v1572
      %v1587 = vpack.c.b16 %v1575, %v1574
      %v1588 = vpack.c.b16 %v1577, %v1576
      %v1589 = vpack.c.b16 %v1579, %v1578
      %v1590 = vpack.c.b16 %v1581, %v1580
      %v1591 = vpack.c.b16 %v1583, %v1582
      %1600 = vmatpush.bf16.msra.mxu0 %v1591
      %1601 = vmatpush.bf16.msra.mxu0 %v1590
      %1602 = vmatpush.bf16.msra.mxu0 %v1589
      %1603 = vmatpush.bf16.msra.mxu0 %v1588
      %1604 = vmatpush.bf16.msra.mxu0 %v1587
      %1605 = vmatpush.bf16.msra.mxu0 %v1586
      %1606 = vmatpush.bf16.msra.mxu0 %v1585
      %1607 = vmatpush.bf16.msra.mxu0 %v1584
      %1608 = vmatmul.bf16.gmra.mxu0 %v1511
      %v1609 = vpop.f32.mrf.mxu0
      %v1610 = vadd.f32 0.0, %v1609
      %v1611 = vpop.f32.mrf.mxu0
      %v1612 = vadd.f32 0.0, %v1611
      %1613 = vmatmul.bf16.gmra.mxu0 %v1512
      %v1614 = vpop.f32.mrf.mxu0
      %v1615 = vpop.f32.mrf.mxu0
      %v1616 = vadd.f32 0.0, %v1615
      %1617 = vmatmul.bf16.gmra.mxu0 %v1513
      %v1618 = vpop.f32.mrf.mxu0
      %v1619 = vadd.f32 0.0, %v1618
      %v1620 = vpop.f32.mrf.mxu0
      %1621 = vmatmul.bf16.gmra.mxu0 %v1514
      %v1622 = vpop.f32.mrf.mxu0
      %v1623 = vadd.f32 0.0, %v1622
      %v1624 = vpop.f32.mrf.mxu0
      %v1625 = vadd.f32 0.0, %v1624
      %1626 = vmatmul.bf16.gmra.mxu0 %v1515
      %v1627 = vpop.f32.mrf.mxu0
      %v1628 = vpop.f32.mrf.mxu0
      %v1629 = vadd.f32 0.0, %v1628
      %1630 = vmatmul.bf16.gmra.mxu0 %v1516
      %v1631 = vpop.f32.mrf.mxu0
      %v1632 = vadd.f32 0.0, %v1631
      %v1633 = vpop.f32.mrf.mxu0
      %1634 = vmatmul.bf16.gmra.mxu0 %v1517
      %v1635 = vpop.f32.mrf.mxu0
      %v1636 = vadd.f32 0.0, %v1635
      %v1637 = vpop.f32.mrf.mxu0
      %v1638 = vadd.f32 0.0, %v1637
      %1639 = vmatmul.bf16.gmra.mxu0 %v1518
      %v1640 = vpop.f32.mrf.mxu0
      %v1641 = vpop.f32.mrf.mxu0
      %v1642 = vadd.f32 0.0, %v1641
      %1643 = vmatmul.bf16.gmra.mxu0 %v1519
      %v1644 = vpop.f32.mrf.mxu0
      %v1645 = vadd.f32 0.0, %v1644
      %v1646 = vpop.f32.mrf.mxu0
      %1647 = vmatmul.bf16.gmra.mxu0 %v1520
      %v1648 = vpop.f32.mrf.mxu0
      %v1649 = vadd.f32 0.0, %v1648
      %v1650 = vpop.f32.mrf.mxu0
      %v1651 = vadd.f32 0.0, %v1650
      %1652 = vmatmul.bf16.gmra.mxu0 %v1521
      %v1653 = vpop.f32.mrf.mxu0
      %v1654 = vpop.f32.mrf.mxu0
      %v1655 = vadd.f32 0.0, %v1654
      %1656 = vmatmul.bf16.gmra.mxu0 %v1522
      %v1657 = vpop.f32.mrf.mxu0
      %v1658 = vadd.f32 0.0, %v1657
      %v1659 = vpop.f32.mrf.mxu0
      %1660 = vmatmul.bf16.gmra.mxu0 %v1523
      %v1661 = vpop.f32.mrf.mxu0
      %v1662 = vadd.f32 0.0, %v1661
      %v1663 = vpop.f32.mrf.mxu0
      %v1664 = vadd.f32 0.0, %v1663
      %1665 = vmatmul.bf16.gmra.mxu0 %v1524
      %v1666 = vpop.f32.mrf.mxu0
      %v1667 = vpop.f32.mrf.mxu0
      %v1668 = vadd.f32 0.0, %v1667
      %1669 = vmatmul.bf16.gmra.mxu0 %v1525
      %v1670 = vpop.f32.mrf.mxu0
      %v1671 = vadd.f32 0.0, %v1670
      %v1672 = vpop.f32.mrf.mxu0
      %1673 = vmatmul.bf16.gmra.mxu0 %v1526
      %v1674 = vpop.f32.mrf.mxu0
      %v1675 = vadd.f32 0.0, %v1674
      %v1676 = vpop.f32.mrf.mxu0
      %v1677 = vadd.f32 0.0, %v1676
      %1678 = vmatmul.bf16.gmra.mxu0 %v1527
      %v1679 = vpop.f32.mrf.mxu0
      %v1680 = vpop.f32.mrf.mxu0
      %v1681 = vadd.f32 0.0, %v1680
      %1682 = vmatmul.bf16.gmra.mxu0 %v1528
      %v1683 = vpop.f32.mrf.mxu0
      %v1684 = vadd.f32 0.0, %v1683
      %v1685 = vpop.f32.mrf.mxu0
      %1686 = vmatmul.bf16.gmra.mxu0 %v1529
      %v1687 = vpop.f32.mrf.mxu0
      %v1688 = vadd.f32 0.0, %v1687
      %v1689 = vpop.f32.mrf.mxu0
      %v1690 = vadd.f32 0.0, %v1689
      %1691 = vmatmul.bf16.gmra.mxu0 %v1530
      %v1692 = vpop.f32.mrf.mxu0
      %v1693 = vpop.f32.mrf.mxu0
      %v1694 = vadd.f32 0.0, %v1693
      %1695 = vmatmul.bf16.gmra.mxu0 %v1531
      %v1696 = vpop.f32.mrf.mxu0
      %v1697 = vadd.f32 0.0, %v1696
      %v1698 = vpop.f32.mrf.mxu0
      %1699 = vmatmul.bf16.gmra.mxu0 %v1532
      %v1700 = vpop.f32.mrf.mxu0
      %v1701 = vadd.f32 0.0, %v1700
      %v1702 = vpop.f32.mrf.mxu0
      %v1703 = vadd.f32 0.0, %v1702
      %1704 = vmatmul.bf16.gmra.mxu0 %v1533
      %v1705 = vpop.f32.mrf.mxu0
      %v1706 = vpop.f32.mrf.mxu0
      %v1707 = vadd.f32 0.0, %v1706
      %1708 = vmatmul.bf16.gmra.mxu0 %v1534
      %v1709 = vpop.f32.mrf.mxu0
      %v1710 = vadd.f32 0.0, %v1709
      %v1711 = vpop.f32.mrf.mxu0
      %1712 = vdwg.mxu0
      %v1713 = vadd.f32 %v1479, %v1610
      %v1714 = vadd.f32 %v1480, %v1612
      %v1715 = vadd.f32 %v1481, %v1616
      %v1716 = vadd.f32 %v1482, %v1619
      %v1717 = vadd.f32 %v1483, %v1623
      %v1718 = vadd.f32 %v1484, %v1625
      %v1719 = vadd.f32 %v1485, %v1629
      %v1720 = vadd.f32 %v1486, %v1632
      %v1721 = vadd.f32 %v1487, %v1636
      %v1722 = vadd.f32 %v1488, %v1638
      %v1723 = vadd.f32 %v1489, %v1642
      %v1724 = vadd.f32 %v1490, %v1645
      %v1725 = vadd.f32 %v1491, %v1649
      %v1726 = vadd.f32 %v1492, %v1651
      %v1727 = vadd.f32 %v1493, %v1655
      %v1728 = vadd.f32 %v1494, %v1658
      %v1729 = vadd.f32 %v1495, %v1662
      %v1730 = vadd.f32 %v1496, %v1664
      %v1731 = vadd.f32 %v1497, %v1668
      %v1732 = vadd.f32 %v1498, %v1671
      %v1733 = vadd.f32 %v1499, %v1675
      %v1734 = vadd.f32 %v1500, %v1677
      %v1735 = vadd.f32 %v1501, %v1681
      %v1736 = vadd.f32 %v1502, %v1684
      %v1737 = vadd.f32 %v1503, %v1688
      %v1738 = vadd.f32 %v1504, %v1690
      %v1739 = vadd.f32 %v1505, %v1694
      %v1740 = vadd.f32 %v1506, %v1697
      %v1741 = vadd.f32 %v1507, %v1701
      %v1742 = vadd.f32 %v1508, %v1703
      %v1743 = vadd.f32 %v1509, %v1707
      %v1744 = vadd.f32 %v1510, %v1710
      %v1745 = vpack.c.bf16 %v604, %v603
      %v1746 = vpack.c.bf16 %v606, %v605
      %v1747 = vpack.c.bf16 %v608, %v607
      %v1748 = vpack.c.bf16 %v610, %v609
      %v1749 = vpack.c.bf16 %v612, %v611
      %v1750 = vpack.c.bf16 %v614, %v613
      %v1751 = vpack.c.bf16 %v616, %v615
      %v1752 = vpack.c.bf16 %v618, %v617
      %v1753 = vpack.c.bf16 %v620, %v619
      %v1754 = vpack.c.bf16 %v622, %v621
      %v1755 = vpack.c.bf16 %v624, %v623
      %v1756 = vpack.c.bf16 %v626, %v625
      %v1757 = vpack.c.bf16 %v628, %v627
      %v1758 = vpack.c.bf16 %v630, %v629
      %v1759 = vpack.c.bf16 %v632, %v631
      %v1760 = vpack.c.bf16 %v634, %v633
      %v1761 = vpack.c.bf16 %v636, %v635
      %v1762 = vpack.c.bf16 %v638, %v637
      %v1763 = vpack.c.bf16 %v640, %v639
      %v1764 = vpack.c.bf16 %v642, %v641
      %v1765 = vpack.c.bf16 %v644, %v643
      %v1766 = vpack.c.bf16 %v646, %v645
      %v1767 = vpack.c.bf16 %v648, %v647
      %v1768 = vpack.c.bf16 %v650, %v649
      %s1769 = scalar_lea.vmem %s2, 256
      %v1770 = vld [vmem:[%s1769] sm:$0xf]
      %v1771 = vld [vmem:[%s1769 + $0x4] sm:$0xf]
      %v1772 = vld [vmem:[%s1769 + $0x8] sm:$0xf]
      %v1773 = vld [vmem:[%s1769 + $0xc] sm:$0xf]
      %v1774 = vld [vmem:[%s1769 + $0x10] sm:$0xf]
      %v1775 = vld [vmem:[%s1769 + $0x14] sm:$0xf]
      %v1776 = vld [vmem:[%s1769 + $0x18] sm:$0xf]
      %v1777 = vld [vmem:[%s1769 + $0x1c] sm:$0xf]
      %v1778 = vld [vmem:[%s1769 + $0x20] sm:$0xf]
      %v1779 = vld [vmem:[%s1769 + $0x24] sm:$0xf]
      %v1780 = vld [vmem:[%s1769 + $0x28] sm:$0xf]
      %v1781 = vld [vmem:[%s1769 + $0x2c] sm:$0xf]
      %v1782 = vld [vmem:[%s1769 + $0x30] sm:$0xf]
      %v1783 = vld [vmem:[%s1769 + $0x34] sm:$0xf]
      %v1784 = vld [vmem:[%s1769 + $0x38] sm:$0xf]
      %v1785 = vld [vmem:[%s1769 + $0x3c] sm:$0xf]
      %v1802 = vunpack.c.l.b16 %v1770
      %v1803 = vunpack.c.l.b16 %v1771
      %v1804 = vunpack.c.l.b16 %v1772
      %v1805 = vunpack.c.l.b16 %v1773
      %v1806 = vunpack.c.l.b16 %v1774
      %v1807 = vunpack.c.l.b16 %v1775
      %v1808 = vunpack.c.l.b16 %v1776
      %v1809 = vunpack.c.l.b16 %v1777
      %v1810 = vunpack.c.l.b16 %v1778
      %v1811 = vunpack.c.l.b16 %v1779
      %v1812 = vunpack.c.l.b16 %v1780
      %v1813 = vunpack.c.l.b16 %v1781
      %v1814 = vunpack.c.l.b16 %v1782
      %v1815 = vunpack.c.l.b16 %v1783
      %v1816 = vunpack.c.l.b16 %v1784
      %v1817 = vunpack.c.l.b16 %v1785
      %v1818 = vpack.c.b16 %v1803, %v1802
      %v1819 = vpack.c.b16 %v1805, %v1804
      %v1820 = vpack.c.b16 %v1807, %v1806
      %v1821 = vpack.c.b16 %v1809, %v1808
      %v1822 = vpack.c.b16 %v1811, %v1810
      %v1823 = vpack.c.b16 %v1813, %v1812
      %v1824 = vpack.c.b16 %v1815, %v1814
      %v1825 = vpack.c.b16 %v1817, %v1816
      %1834 = vmatpush.bf16.msra.mxu0 %v1825
      %1835 = vmatpush.bf16.msra.mxu0 %v1824
      %1836 = vmatpush.bf16.msra.mxu0 %v1823
      %1837 = vmatpush.bf16.msra.mxu0 %v1822
      %1838 = vmatpush.bf16.msra.mxu0 %v1821
      %1839 = vmatpush.bf16.msra.mxu0 %v1820
      %1840 = vmatpush.bf16.msra.mxu0 %v1819
      %1841 = vmatpush.bf16.msra.mxu0 %v1818
      %1842 = vmatmul.bf16.gmra.mxu0 %v1745
      %v1843 = vpop.f32.mrf.mxu0
      %v1844 = vadd.f32 0.0, %v1843
      %v1845 = vpop.f32.mrf.mxu0
      %v1846 = vadd.f32 0.0, %v1845
      %1847 = vmatmul.bf16.gmra.mxu0 %v1746
      %v1848 = vpop.f32.mrf.mxu0
      %v1849 = vpop.f32.mrf.mxu0
      %v1850 = vadd.f32 0.0, %v1849
      %1851 = vmatmul.bf16.gmra.mxu0 %v1747
      %v1852 = vpop.f32.mrf.mxu0
      %v1853 = vadd.f32 0.0, %v1852
      %v1854 = vpop.f32.mrf.mxu0
      %1855 = vmatmul.bf16.gmra.mxu0 %v1748
      %v1856 = vpop.f32.mrf.mxu0
      %v1857 = vadd.f32 0.0, %v1856
      %v1858 = vpop.f32.mrf.mxu0
      %v1859 = vadd.f32 0.0, %v1858
      %1860 = vmatmul.bf16.gmra.mxu0 %v1749
      %v1861 = vpop.f32.mrf.mxu0
      %v1862 = vpop.f32.mrf.mxu0
      %v1863 = vadd.f32 0.0, %v1862
      %1864 = vmatmul.bf16.gmra.mxu0 %v1750
      %v1865 = vpop.f32.mrf.mxu0
      %v1866 = vadd.f32 0.0, %v1865
      %v1867 = vpop.f32.mrf.mxu0
      %1868 = vmatmul.bf16.gmra.mxu0 %v1751
      %v1869 = vpop.f32.mrf.mxu0
      %v1870 = vadd.f32 0.0, %v1869
      %v1871 = vpop.f32.mrf.mxu0
      %v1872 = vadd.f32 0.0, %v1871
      %1873 = vmatmul.bf16.gmra.mxu0 %v1752
      %v1874 = vpop.f32.mrf.mxu0
      %v1875 = vpop.f32.mrf.mxu0
      %v1876 = vadd.f32 0.0, %v1875
      %1877 = vmatmul.bf16.gmra.mxu0 %v1753
      %v1878 = vpop.f32.mrf.mxu0
      %v1879 = vadd.f32 0.0, %v1878
      %v1880 = vpop.f32.mrf.mxu0
      %1881 = vmatmul.bf16.gmra.mxu0 %v1754
      %v1882 = vpop.f32.mrf.mxu0
      %v1883 = vadd.f32 0.0, %v1882
      %v1884 = vpop.f32.mrf.mxu0
      %v1885 = vadd.f32 0.0, %v1884
      %1886 = vmatmul.bf16.gmra.mxu0 %v1755
      %v1887 = vpop.f32.mrf.mxu0
      %v1888 = vpop.f32.mrf.mxu0
      %v1889 = vadd.f32 0.0, %v1888
      %1890 = vmatmul.bf16.gmra.mxu0 %v1756
      %v1891 = vpop.f32.mrf.mxu0
      %v1892 = vadd.f32 0.0, %v1891
      %v1893 = vpop.f32.mrf.mxu0
      %1894 = vmatmul.bf16.gmra.mxu0 %v1757
      %v1895 = vpop.f32.mrf.mxu0
      %v1896 = vadd.f32 0.0, %v1895
      %v1897 = vpop.f32.mrf.mxu0
      %v1898 = vadd.f32 0.0, %v1897
      %1899 = vmatmul.bf16.gmra.mxu0 %v1758
      %v1900 = vpop.f32.mrf.mxu0
      %v1901 = vpop.f32.mrf.mxu0
      %v1902 = vadd.f32 0.0, %v1901
      %1903 = vmatmul.bf16.gmra.mxu0 %v1759
      %v1904 = vpop.f32.mrf.mxu0
      %v1905 = vadd.f32 0.0, %v1904
      %v1906 = vpop.f32.mrf.mxu0
      %1907 = vmatmul.bf16.gmra.mxu0 %v1760
      %v1908 = vpop.f32.mrf.mxu0
      %v1909 = vadd.f32 0.0, %v1908
      %v1910 = vpop.f32.mrf.mxu0
      %v1911 = vadd.f32 0.0, %v1910
      %1912 = vmatmul.bf16.gmra.mxu0 %v1761
      %v1913 = vpop.f32.mrf.mxu0
      %v1914 = vpop.f32.mrf.mxu0
      %v1915 = vadd.f32 0.0, %v1914
      %1916 = vmatmul.bf16.gmra.mxu0 %v1762
      %v1917 = vpop.f32.mrf.mxu0
      %v1918 = vadd.f32 0.0, %v1917
      %v1919 = vpop.f32.mrf.mxu0
      %1920 = vmatmul.bf16.gmra.mxu0 %v1763
      %v1921 = vpop.f32.mrf.mxu0
      %v1922 = vadd.f32 0.0, %v1921
      %v1923 = vpop.f32.mrf.mxu0
      %v1924 = vadd.f32 0.0, %v1923
      %1925 = vmatmul.bf16.gmra.mxu0 %v1764
      %v1926 = vpop.f32.mrf.mxu0
      %v1927 = vpop.f32.mrf.mxu0
      %v1928 = vadd.f32 0.0, %v1927
      %1929 = vmatmul.bf16.gmra.mxu0 %v1765
      %v1930 = vpop.f32.mrf.mxu0
      %v1931 = vadd.f32 0.0, %v1930
      %v1932 = vpop.f32.mrf.mxu0
      %1933 = vmatmul.bf16.gmra.mxu0 %v1766
      %v1934 = vpop.f32.mrf.mxu0
      %v1935 = vadd.f32 0.0, %v1934
      %v1936 = vpop.f32.mrf.mxu0
      %v1937 = vadd.f32 0.0, %v1936
      %1938 = vmatmul.bf16.gmra.mxu0 %v1767
      %v1939 = vpop.f32.mrf.mxu0
      %v1940 = vpop.f32.mrf.mxu0
      %v1941 = vadd.f32 0.0, %v1940
      %1942 = vmatmul.bf16.gmra.mxu0 %v1768
      %v1943 = vpop.f32.mrf.mxu0
      %v1944 = vadd.f32 0.0, %v1943
      %v1945 = vpop.f32.mrf.mxu0
      %1946 = vdwg.mxu0
      %v1947 = vadd.f32 %v1713, %v1844
      %v1948 = vadd.f32 %v1714, %v1846
      %v1949 = vadd.f32 %v1715, %v1850
      %v1950 = vadd.f32 %v1716, %v1853
      %v1951 = vadd.f32 %v1717, %v1857
      %v1952 = vadd.f32 %v1718, %v1859
      %v1953 = vadd.f32 %v1719, %v1863
      %v1954 = vadd.f32 %v1720, %v1866
      %v1955 = vadd.f32 %v1721, %v1870
      %v1956 = vadd.f32 %v1722, %v1872
      %v1957 = vadd.f32 %v1723, %v1876
      %v1958 = vadd.f32 %v1724, %v1879
      %v1959 = vadd.f32 %v1725, %v1883
      %v1960 = vadd.f32 %v1726, %v1885
      %v1961 = vadd.f32 %v1727, %v1889
      %v1962 = vadd.f32 %v1728, %v1892
      %v1963 = vadd.f32 %v1729, %v1896
      %v1964 = vadd.f32 %v1730, %v1898
      %v1965 = vadd.f32 %v1731, %v1902
      %v1966 = vadd.f32 %v1732, %v1905
      %v1967 = vadd.f32 %v1733, %v1909
      %v1968 = vadd.f32 %v1734, %v1911
      %v1969 = vadd.f32 %v1735, %v1915
      %v1970 = vadd.f32 %v1736, %v1918
      %v1971 = vadd.f32 %v1737, %v1922
      %v1972 = vadd.f32 %v1738, %v1924
      %v1973 = vadd.f32 %v1739, %v1928
      %v1974 = vadd.f32 %v1740, %v1931
      %v1975 = vadd.f32 %v1741, %v1935
      %v1976 = vadd.f32 %v1742, %v1937
      %v1977 = vadd.f32 %v1743, %v1941
      %v1978 = vadd.f32 %v1744, %v1944
      %v1979 = vpack.c.bf16 %v868, %v869
      %v1980 = vpack.c.bf16 %v866, %v867
      %v1981 = vpack.c.bf16 %v864, %v865
      %v1982 = vpack.c.bf16 %v862, %v863
      %v1983 = vpack.c.bf16 %v860, %v861
      %v1984 = vpack.c.bf16 %v858, %v859
      %v1985 = vpack.c.bf16 %v856, %v857
      %v1986 = vpack.c.bf16 %v854, %v855
      %v1987 = vpack.c.bf16 %v852, %v853
      %v1988 = vpack.c.bf16 %v850, %v851
      %v1989 = vpack.c.bf16 %v848, %v849
      %v1990 = vpack.c.bf16 %v846, %v847
      %v1991 = vpack.c.bf16 %v844, %v845
      %v1992 = vpack.c.bf16 %v842, %v843
      %v1993 = vpack.c.bf16 %v840, %v841
      %v1994 = vpack.c.bf16 %v838, %v839
      %v1995 = vpack.c.bf16 %v836, %v837
      %v1996 = vpack.c.bf16 %v834, %v835
      %v1997 = vpack.c.bf16 %v832, %v833
      %v1998 = vpack.c.bf16 %v830, %v831
      %v1999 = vpack.c.bf16 %v828, %v829
      %v2000 = vpack.c.bf16 %v826, %v827
      %v2001 = vpack.c.bf16 %v824, %v825
      %v2002 = vpack.c.bf16 %v822, %v823
      %s2003 = scalar_lea.vmem %s2, 320
      %v2004 = vld [vmem:[%s2003] sm:$0xf]
      %v2005 = vld [vmem:[%s2003 + $0x4] sm:$0xf]
      %v2006 = vld [vmem:[%s2003 + $0x8] sm:$0xf]
      %v2007 = vld [vmem:[%s2003 + $0xc] sm:$0xf]
      %v2008 = vld [vmem:[%s2003 + $0x10] sm:$0xf]
      %v2009 = vld [vmem:[%s2003 + $0x14] sm:$0xf]
      %v2010 = vld [vmem:[%s2003 + $0x18] sm:$0xf]
      %v2011 = vld [vmem:[%s2003 + $0x1c] sm:$0xf]
      %v2012 = vld [vmem:[%s2003 + $0x20] sm:$0xf]
      %v2013 = vld [vmem:[%s2003 + $0x24] sm:$0xf]
      %v2014 = vld [vmem:[%s2003 + $0x28] sm:$0xf]
      %v2015 = vld [vmem:[%s2003 + $0x2c] sm:$0xf]
      %v2016 = vld [vmem:[%s2003 + $0x30] sm:$0xf]
      %v2017 = vld [vmem:[%s2003 + $0x34] sm:$0xf]
      %v2018 = vld [vmem:[%s2003 + $0x38] sm:$0xf]
      %v2019 = vld [vmem:[%s2003 + $0x3c] sm:$0xf]
      %v2036 = vunpack.c.l.b16 %v2004
      %v2037 = vunpack.c.l.b16 %v2005
      %v2038 = vunpack.c.l.b16 %v2006
      %v2039 = vunpack.c.l.b16 %v2007
      %v2040 = vunpack.c.l.b16 %v2008
      %v2041 = vunpack.c.l.b16 %v2009
      %v2042 = vunpack.c.l.b16 %v2010
      %v2043 = vunpack.c.l.b16 %v2011
      %v2044 = vunpack.c.l.b16 %v2012
      %v2045 = vunpack.c.l.b16 %v2013
      %v2046 = vunpack.c.l.b16 %v2014
      %v2047 = vunpack.c.l.b16 %v2015
      %v2048 = vunpack.c.l.b16 %v2016
      %v2049 = vunpack.c.l.b16 %v2017
      %v2050 = vunpack.c.l.b16 %v2018
      %v2051 = vunpack.c.l.b16 %v2019
      %v2052 = vpack.c.b16 %v2037, %v2036
      %v2053 = vpack.c.b16 %v2039, %v2038
      %v2054 = vpack.c.b16 %v2041, %v2040
      %v2055 = vpack.c.b16 %v2043, %v2042
      %v2056 = vpack.c.b16 %v2045, %v2044
      %v2057 = vpack.c.b16 %v2047, %v2046
      %v2058 = vpack.c.b16 %v2049, %v2048
      %v2059 = vpack.c.b16 %v2051, %v2050
      %2068 = vmatpush.bf16.msra.mxu0 %v2059
      %2069 = vmatpush.bf16.msra.mxu0 %v2058
      %2070 = vmatpush.bf16.msra.mxu0 %v2057
      %2071 = vmatpush.bf16.msra.mxu0 %v2056
      %2072 = vmatpush.bf16.msra.mxu0 %v2055
      %2073 = vmatpush.bf16.msra.mxu0 %v2054
      %2074 = vmatpush.bf16.msra.mxu0 %v2053
      %2075 = vmatpush.bf16.msra.mxu0 %v2052
      %2076 = vmatmul.bf16.gmra.mxu0 %v1979
      %v2077 = vpop.f32.mrf.mxu0
      %v2078 = vadd.f32 0.0, %v2077
      %v2079 = vpop.f32.mrf.mxu0
      %v2080 = vadd.f32 0.0, %v2079
      %2081 = vmatmul.bf16.gmra.mxu0 %v1980
      %v2082 = vpop.f32.mrf.mxu0
      %v2083 = vpop.f32.mrf.mxu0
      %v2084 = vadd.f32 0.0, %v2083
      %2085 = vmatmul.bf16.gmra.mxu0 %v1981
      %v2086 = vpop.f32.mrf.mxu0
      %v2087 = vadd.f32 0.0, %v2086
      %v2088 = vpop.f32.mrf.mxu0
      %2089 = vmatmul.bf16.gmra.mxu0 %v1982
      %v2090 = vpop.f32.mrf.mxu0
      %v2091 = vadd.f32 0.0, %v2090
      %v2092 = vpop.f32.mrf.mxu0
      %v2093 = vadd.f32 0.0, %v2092
      %2094 = vmatmul.bf16.gmra.mxu0 %v1983
      %v2095 = vpop.f32.mrf.mxu0
      %v2096 = vpop.f32.mrf.mxu0
      %v2097 = vadd.f32 0.0, %v2096
      %2098 = vmatmul.bf16.gmra.mxu0 %v1984
      %v2099 = vpop.f32.mrf.mxu0
      %v2100 = vadd.f32 0.0, %v2099
      %v2101 = vpop.f32.mrf.mxu0
      %2102 = vmatmul.bf16.gmra.mxu0 %v1985
      %v2103 = vpop.f32.mrf.mxu0
      %v2104 = vadd.f32 0.0, %v2103
      %v2105 = vpop.f32.mrf.mxu0
      %v2106 = vadd.f32 0.0, %v2105
      %2107 = vmatmul.bf16.gmra.mxu0 %v1986
      %v2108 = vpop.f32.mrf.mxu0
      %v2109 = vpop.f32.mrf.mxu0
      %v2110 = vadd.f32 0.0, %v2109
      %2111 = vmatmul.bf16.gmra.mxu0 %v1987
      %v2112 = vpop.f32.mrf.mxu0
      %v2113 = vadd.f32 0.0, %v2112
      %v2114 = vpop.f32.mrf.mxu0
      %2115 = vmatmul.bf16.gmra.mxu0 %v1988
      %v2116 = vpop.f32.mrf.mxu0
      %v2117 = vadd.f32 0.0, %v2116
      %v2118 = vpop.f32.mrf.mxu0
      %v2119 = vadd.f32 0.0, %v2118
      %2120 = vmatmul.bf16.gmra.mxu0 %v1989
      %v2121 = vpop.f32.mrf.mxu0
      %v2122 = vpop.f32.mrf.mxu0
      %v2123 = vadd.f32 0.0, %v2122
      %2124 = vmatmul.bf16.gmra.mxu0 %v1990
      %v2125 = vpop.f32.mrf.mxu0
      %v2126 = vadd.f32 0.0, %v2125
      %v2127 = vpop.f32.mrf.mxu0
      %2128 = vmatmul.bf16.gmra.mxu0 %v1991
      %v2129 = vpop.f32.mrf.mxu0
      %v2130 = vadd.f32 0.0, %v2129
      %v2131 = vpop.f32.mrf.mxu0
      %v2132 = vadd.f32 0.0, %v2131
      %2133 = vmatmul.bf16.gmra.mxu0 %v1992
      %v2134 = vpop.f32.mrf.mxu0
      %v2135 = vpop.f32.mrf.mxu0
      %v2136 = vadd.f32 0.0, %v2135
      %2137 = vmatmul.bf16.gmra.mxu0 %v1993
      %v2138 = vpop.f32.mrf.mxu0
      %v2139 = vadd.f32 0.0, %v2138
      %v2140 = vpop.f32.mrf.mxu0
      %2141 = vmatmul.bf16.gmra.mxu0 %v1994
      %v2142 = vpop.f32.mrf.mxu0
      %v2143 = vadd.f32 0.0, %v2142
      %v2144 = vpop.f32.mrf.mxu0
      %v2145 = vadd.f32 0.0, %v2144
      %2146 = vmatmul.bf16.gmra.mxu0 %v1995
      %v2147 = vpop.f32.mrf.mxu0
      %v2148 = vpop.f32.mrf.mxu0
      %v2149 = vadd.f32 0.0, %v2148
      %2150 = vmatmul.bf16.gmra.mxu0 %v1996
      %v2151 = vpop.f32.mrf.mxu0
      %v2152 = vadd.f32 0.0, %v2151
      %v2153 = vpop.f32.mrf.mxu0
      %2154 = vmatmul.bf16.gmra.mxu0 %v1997
      %v2155 = vpop.f32.mrf.mxu0
      %v2156 = vadd.f32 0.0, %v2155
      %v2157 = vpop.f32.mrf.mxu0
      %v2158 = vadd.f32 0.0, %v2157
      %2159 = vmatmul.bf16.gmra.mxu0 %v1998
      %v2160 = vpop.f32.mrf.mxu0
      %v2161 = vpop.f32.mrf.mxu0
      %v2162 = vadd.f32 0.0, %v2161
      %2163 = vmatmul.bf16.gmra.mxu0 %v1999
      %v2164 = vpop.f32.mrf.mxu0
      %v2165 = vadd.f32 0.0, %v2164
      %v2166 = vpop.f32.mrf.mxu0
      %2167 = vmatmul.bf16.gmra.mxu0 %v2000
      %v2168 = vpop.f32.mrf.mxu0
      %v2169 = vadd.f32 0.0, %v2168
      %v2170 = vpop.f32.mrf.mxu0
      %v2171 = vadd.f32 0.0, %v2170
      %2172 = vmatmul.bf16.gmra.mxu0 %v2001
      %v2173 = vpop.f32.mrf.mxu0
      %v2174 = vpop.f32.mrf.mxu0
      %v2175 = vadd.f32 0.0, %v2174
      %2176 = vmatmul.bf16.gmra.mxu0 %v2002
      %v2177 = vpop.f32.mrf.mxu0
      %v2178 = vadd.f32 0.0, %v2177
      %v2179 = vpop.f32.mrf.mxu0
      %2180 = vdwg.mxu0
      %v2181 = vadd.f32 %v1947, %v2078
      %v2182 = vadd.f32 %v1948, %v2080
      %v2183 = vadd.f32 %v1949, %v2084
      %v2184 = vadd.f32 %v1950, %v2087
      %v2185 = vadd.f32 %v1951, %v2091
      %v2186 = vadd.f32 %v1952, %v2093
      %v2187 = vadd.f32 %v1953, %v2097
      %v2188 = vadd.f32 %v1954, %v2100
      %v2189 = vadd.f32 %v1955, %v2104
      %v2190 = vadd.f32 %v1956, %v2106
      %v2191 = vadd.f32 %v1957, %v2110
      %v2192 = vadd.f32 %v1958, %v2113
      %v2193 = vadd.f32 %v1959, %v2117
      %v2194 = vadd.f32 %v1960, %v2119
      %v2195 = vadd.f32 %v1961, %v2123
      %v2196 = vadd.f32 %v1962, %v2126
      %v2197 = vadd.f32 %v1963, %v2130
      %v2198 = vadd.f32 %v1964, %v2132
      %v2199 = vadd.f32 %v1965, %v2136
      %v2200 = vadd.f32 %v1966, %v2139
      %v2201 = vadd.f32 %v1967, %v2143
      %v2202 = vadd.f32 %v1968, %v2145
      %v2203 = vadd.f32 %v1969, %v2149
      %v2204 = vadd.f32 %v1970, %v2152
      %v2205 = vadd.f32 %v1971, %v2156
      %v2206 = vadd.f32 %v1972, %v2158
      %v2207 = vadd.f32 %v1973, %v2162
      %v2208 = vadd.f32 %v1974, %v2165
      %v2209 = vadd.f32 %v1975, %v2169
      %v2210 = vadd.f32 %v1976, %v2171
      %v2211 = vadd.f32 %v1977, %v2175
      %v2212 = vadd.f32 %v1978, %v2178
      %v2213 = vpack.c.bf16 %v715, %v716
      %v2214 = vpack.c.bf16 %v713, %v714
      %v2215 = vpack.c.bf16 %v711, %v712
      %s2216 = scalar_lea.vmem %s2, 384
      %v2217 = vld [vmem:[%s2216] sm:$0xf]
      %v2218 = vld [vmem:[%s2216 + $0x4] sm:$0xf]
      %v2219 = vld [vmem:[%s2216 + $0x8] sm:$0xf]
      %v2220 = vld [vmem:[%s2216 + $0xc] sm:$0xf]
      %v2221 = vld [vmem:[%s2216 + $0x10] sm:$0xf]
      %v2222 = vld [vmem:[%s2216 + $0x14] sm:$0xf]
      %v2223 = vld [vmem:[%s2216 + $0x18] sm:$0xf]
      %v2224 = vld [vmem:[%s2216 + $0x1c] sm:$0xf]
      %v2225 = vld [vmem:[%s2216 + $0x20] sm:$0xf]
      %v2226 = vld [vmem:[%s2216 + $0x24] sm:$0xf]
      %v2227 = vld [vmem:[%s2216 + $0x28] sm:$0xf]
      %v2228 = vld [vmem:[%s2216 + $0x2c] sm:$0xf]
      %v2229 = vld [vmem:[%s2216 + $0x30] sm:$0xf]
      %v2230 = vld [vmem:[%s2216 + $0x34] sm:$0xf]
      %v2231 = vld [vmem:[%s2216 + $0x38] sm:$0xf]
      %v2232 = vld [vmem:[%s2216 + $0x3c] sm:$0xf]
      %v2249 = vunpack.c.l.b16 %v2217
      %v2250 = vunpack.c.l.b16 %v2218
      %v2251 = vunpack.c.l.b16 %v2219
      %v2252 = vunpack.c.l.b16 %v2220
      %v2253 = vunpack.c.l.b16 %v2221
      %v2254 = vunpack.c.l.b16 %v2222
      %v2255 = vunpack.c.l.b16 %v2223
      %v2256 = vunpack.c.l.b16 %v2224
      %v2257 = vunpack.c.l.b16 %v2225
      %v2258 = vunpack.c.l.b16 %v2226
      %v2259 = vunpack.c.l.b16 %v2227
      %v2260 = vunpack.c.l.b16 %v2228
      %v2261 = vunpack.c.l.b16 %v2229
      %v2262 = vunpack.c.l.b16 %v2230
      %v2263 = vunpack.c.l.b16 %v2231
      %v2264 = vunpack.c.l.b16 %v2232
      %v2265 = vpack.c.b16 %v2250, %v2249
      %v2266 = vpack.c.b16 %v2252, %v2251
      %v2267 = vpack.c.b16 %v2254, %v2253
      %v2268 = vpack.c.b16 %v2256, %v2255
      %v2269 = vpack.c.b16 %v2258, %v2257
      %v2270 = vpack.c.b16 %v2260, %v2259
      %v2271 = vpack.c.b16 %v2262, %v2261
      %v2272 = vpack.c.b16 %v2264, %v2263
      %2281 = vmatpush.bf16.msra.mxu0 %v2272
      %2282 = vmatpush.bf16.msra.mxu0 %v2271
      %2283 = vmatpush.bf16.msra.mxu0 %v2270
      %2284 = vmatpush.bf16.msra.mxu0 %v2269
      %2285 = vmatpush.bf16.msra.mxu0 %v2268
      %2286 = vmatpush.bf16.msra.mxu0 %v2267
      %2287 = vmatpush.bf16.msra.mxu0 %v2266
      %2288 = vmatpush.bf16.msra.mxu0 %v2265
      %2289 = vmatmul.bf16.gmra.mxu0 %v877
      %v2290 = vpop.f32.mrf.mxu0
      %v2291 = vadd.f32 0.0, %v2290
      %v2292 = vpop.f32.mrf.mxu0
      %v2293 = vadd.f32 0.0, %v2292
      %2294 = vmatmul.bf16.gmra.mxu0 %v878
      %v2295 = vpop.f32.mrf.mxu0
      %v2296 = vpop.f32.mrf.mxu0
      %v2297 = vadd.f32 0.0, %v2296
      %2298 = vmatmul.bf16.gmra.mxu0 %v879
      %v2299 = vpop.f32.mrf.mxu0
      %v2300 = vadd.f32 0.0, %v2299
      %v2301 = vpop.f32.mrf.mxu0
      %2302 = vmatmul.bf16.gmra.mxu0 %v880
      %v2303 = vpop.f32.mrf.mxu0
      %v2304 = vadd.f32 0.0, %v2303
      %v2305 = vpop.f32.mrf.mxu0
      %v2306 = vadd.f32 0.0, %v2305
      %2307 = vmatmul.bf16.gmra.mxu0 %v881
      %v2308 = vpop.f32.mrf.mxu0
      %v2309 = vpop.f32.mrf.mxu0
      %v2310 = vadd.f32 0.0, %v2309
      %2311 = vmatmul.bf16.gmra.mxu0 %v882
      %v2312 = vpop.f32.mrf.mxu0
      %v2313 = vadd.f32 0.0, %v2312
      %v2314 = vpop.f32.mrf.mxu0
      %2315 = vmatmul.bf16.gmra.mxu0 %v883
      %v2316 = vpop.f32.mrf.mxu0
      %v2317 = vadd.f32 0.0, %v2316
      %v2318 = vpop.f32.mrf.mxu0
      %v2319 = vadd.f32 0.0, %v2318
      %2320 = vmatmul.bf16.gmra.mxu0 %v884
      %v2321 = vpop.f32.mrf.mxu0
      %v2322 = vpop.f32.mrf.mxu0
      %v2323 = vadd.f32 0.0, %v2322
      %2324 = vmatmul.bf16.gmra.mxu0 %v885
      %v2325 = vpop.f32.mrf.mxu0
      %v2326 = vadd.f32 0.0, %v2325
      %v2327 = vpop.f32.mrf.mxu0
      %2328 = vmatmul.bf16.gmra.mxu0 %v886
      %v2329 = vpop.f32.mrf.mxu0
      %v2330 = vadd.f32 0.0, %v2329
      %v2331 = vpop.f32.mrf.mxu0
      %v2332 = vadd.f32 0.0, %v2331
      %2333 = vmatmul.bf16.gmra.mxu0 %v887
      %v2334 = vpop.f32.mrf.mxu0
      %v2335 = vpop.f32.mrf.mxu0
      %v2336 = vadd.f32 0.0, %v2335
      %2337 = vmatmul.bf16.gmra.mxu0 %v888
      %v2338 = vpop.f32.mrf.mxu0
      %v2339 = vadd.f32 0.0, %v2338
      %v2340 = vpop.f32.mrf.mxu0
      %2341 = vmatmul.bf16.gmra.mxu0 %v889
      %v2342 = vpop.f32.mrf.mxu0
      %v2343 = vadd.f32 0.0, %v2342
      %v2344 = vpop.f32.mrf.mxu0
      %v2345 = vadd.f32 0.0, %v2344
      %2346 = vmatmul.bf16.gmra.mxu0 %v890
      %v2347 = vpop.f32.mrf.mxu0
      %v2348 = vpop.f32.mrf.mxu0
      %v2349 = vadd.f32 0.0, %v2348
      %2350 = vmatmul.bf16.gmra.mxu0 %v891
      %v2351 = vpop.f32.mrf.mxu0
      %v2352 = vadd.f32 0.0, %v2351
      %v2353 = vpop.f32.mrf.mxu0
      %2354 = vmatmul.bf16.gmra.mxu0 %v892
      %v2355 = vpop.f32.mrf.mxu0
      %v2356 = vadd.f32 0.0, %v2355
      %v2357 = vpop.f32.mrf.mxu0
      %v2358 = vadd.f32 0.0, %v2357
      %2359 = vmatmul.bf16.gmra.mxu0 %v893
      %v2360 = vpop.f32.mrf.mxu0
      %v2361 = vpop.f32.mrf.mxu0
      %v2362 = vadd.f32 0.0, %v2361
      %2363 = vmatmul.bf16.gmra.mxu0 %v894
      %v2364 = vpop.f32.mrf.mxu0
      %v2365 = vadd.f32 0.0, %v2364
      %v2366 = vpop.f32.mrf.mxu0
      %2367 = vmatmul.bf16.gmra.mxu0 %v895
      %v2368 = vpop.f32.mrf.mxu0
      %v2369 = vadd.f32 0.0, %v2368
      %v2370 = vpop.f32.mrf.mxu0
      %v2371 = vadd.f32 0.0, %v2370
      %2372 = vmatmul.bf16.gmra.mxu0 %v896
      %v2373 = vpop.f32.mrf.mxu0
      %v2374 = vpop.f32.mrf.mxu0
      %v2375 = vadd.f32 0.0, %v2374
      %2376 = vmatmul.bf16.gmra.mxu0 %v897
      %v2377 = vpop.f32.mrf.mxu0
      %v2378 = vadd.f32 0.0, %v2377
      %v2379 = vpop.f32.mrf.mxu0
      %2380 = vmatmul.bf16.gmra.mxu0 %v2213
      %v2381 = vpop.f32.mrf.mxu0
      %v2382 = vadd.f32 0.0, %v2381
      %v2383 = vpop.f32.mrf.mxu0
      %v2384 = vadd.f32 0.0, %v2383
      %2385 = vmatmul.bf16.gmra.mxu0 %v2214
      %v2386 = vpop.f32.mrf.mxu0
      %v2387 = vpop.f32.mrf.mxu0
      %v2388 = vadd.f32 0.0, %v2387
      %2389 = vmatmul.bf16.gmra.mxu0 %v2215
      %v2390 = vpop.f32.mrf.mxu0
      %v2391 = vadd.f32 0.0, %v2390
      %v2392 = vpop.f32.mrf.mxu0
      %2393 = vdwg.mxu0
      %v2394 = vadd.f32 %v2181, %v2291
      %v2395 = vadd.f32 %v2182, %v2293
      %v2396 = vadd.f32 %v2183, %v2297
      %v2397 = vadd.f32 %v2184, %v2300
      %v2398 = vadd.f32 %v2185, %v2304
      %v2399 = vadd.f32 %v2186, %v2306
      %v2400 = vadd.f32 %v2187, %v2310
      %v2401 = vadd.f32 %v2188, %v2313
      %v2402 = vadd.f32 %v2189, %v2317
      %v2403 = vadd.f32 %v2190, %v2319
      %v2404 = vadd.f32 %v2191, %v2323
      %v2405 = vadd.f32 %v2192, %v2326
      %v2406 = vadd.f32 %v2193, %v2330
      %v2407 = vadd.f32 %v2194, %v2332
      %v2408 = vadd.f32 %v2195, %v2336
      %v2409 = vadd.f32 %v2196, %v2339
      %v2410 = vadd.f32 %v2197, %v2343
      %v2411 = vadd.f32 %v2198, %v2345
      %v2412 = vadd.f32 %v2199, %v2349
      %v2413 = vadd.f32 %v2200, %v2352
      %v2414 = vadd.f32 %v2201, %v2356
      %v2415 = vadd.f32 %v2202, %v2358
      %v2416 = vadd.f32 %v2203, %v2362
      %v2417 = vadd.f32 %v2204, %v2365
      %v2418 = vadd.f32 %v2205, %v2369
      %v2419 = vadd.f32 %v2206, %v2371
      %v2420 = vadd.f32 %v2207, %v2375
      %v2421 = vadd.f32 %v2208, %v2378
      %v2422 = vadd.f32 %v2209, %v2382
      %v2423 = vadd.f32 %v2210, %v2384
      %v2424 = vadd.f32 %v2211, %v2388
      %v2425 = vadd.f32 %v2212, %v2391
      %v2426 = vpack.c.bf16 %v649, %v648
      %v2427 = vpack.c.bf16 %v651, %v650
      %v2428 = vpack.c.bf16 %v653, %v652
      %s2429 = scalar_lea.vmem %s2, 448
      %v2430 = vld [vmem:[%s2429] sm:$0xf]
      %v2431 = vld [vmem:[%s2429 + $0x4] sm:$0xf]
      %v2432 = vld [vmem:[%s2429 + $0x8] sm:$0xf]
      %v2433 = vld [vmem:[%s2429 + $0xc] sm:$0xf]
      %v2434 = vld [vmem:[%s2429 + $0x10] sm:$0xf]
      %v2435 = vld [vmem:[%s2429 + $0x14] sm:$0xf]
      %v2436 = vld [vmem:[%s2429 + $0x18] sm:$0xf]
      %v2437 = vld [vmem:[%s2429 + $0x1c] sm:$0xf]
      %v2438 = vld [vmem:[%s2429 + $0x20] sm:$0xf]
      %v2439 = vld [vmem:[%s2429 + $0x24] sm:$0xf]
      %v2440 = vld [vmem:[%s2429 + $0x28] sm:$0xf]
      %v2441 = vld [vmem:[%s2429 + $0x2c] sm:$0xf]
      %v2442 = vld [vmem:[%s2429 + $0x30] sm:$0xf]
      %v2443 = vld [vmem:[%s2429 + $0x34] sm:$0xf]
      %v2444 = vld [vmem:[%s2429 + $0x38] sm:$0xf]
      %v2445 = vld [vmem:[%s2429 + $0x3c] sm:$0xf]
      %v2462 = vunpack.c.l.b16 %v2430
      %v2463 = vunpack.c.l.b16 %v2431
      %v2464 = vunpack.c.l.b16 %v2432
      %v2465 = vunpack.c.l.b16 %v2433
      %v2466 = vunpack.c.l.b16 %v2434
      %v2467 = vunpack.c.l.b16 %v2435
      %v2468 = vunpack.c.l.b16 %v2436
      %v2469 = vunpack.c.l.b16 %v2437
      %v2470 = vunpack.c.l.b16 %v2438
      %v2471 = vunpack.c.l.b16 %v2439
      %v2472 = vunpack.c.l.b16 %v2440
      %v2473 = vunpack.c.l.b16 %v2441
      %v2474 = vunpack.c.l.b16 %v2442
      %v2475 = vunpack.c.l.b16 %v2443
      %v2476 = vunpack.c.l.b16 %v2444
      %v2477 = vunpack.c.l.b16 %v2445
      %v2478 = vpack.c.b16 %v2463, %v2462
      %v2479 = vpack.c.b16 %v2465, %v2464
      %v2480 = vpack.c.b16 %v2467, %v2466
      %v2481 = vpack.c.b16 %v2469, %v2468
      %v2482 = vpack.c.b16 %v2471, %v2470
      %v2483 = vpack.c.b16 %v2473, %v2472
      %v2484 = vpack.c.b16 %v2475, %v2474
      %v2485 = vpack.c.b16 %v2477, %v2476
      %2494 = vmatpush.bf16.msra.mxu0 %v2485
      %2495 = vmatpush.bf16.msra.mxu0 %v2484
      %2496 = vmatpush.bf16.msra.mxu0 %v2483
      %2497 = vmatpush.bf16.msra.mxu0 %v2482
      %2498 = vmatpush.bf16.msra.mxu0 %v2481
      %2499 = vmatpush.bf16.msra.mxu0 %v2480
      %2500 = vmatpush.bf16.msra.mxu0 %v2479
      %2501 = vmatpush.bf16.msra.mxu0 %v2478
      %2502 = vmatmul.bf16.gmra.mxu0 %v917
      %v2503 = vpop.f32.mrf.mxu0
      %v2504 = vadd.f32 0.0, %v2503
      %v2505 = vpop.f32.mrf.mxu0
      %v2506 = vadd.f32 0.0, %v2505
      %2507 = vmatmul.bf16.gmra.mxu0 %v918
      %v2508 = vpop.f32.mrf.mxu0
      %v2509 = vpop.f32.mrf.mxu0
      %v2510 = vadd.f32 0.0, %v2509
      %2511 = vmatmul.bf16.gmra.mxu0 %v919
      %v2512 = vpop.f32.mrf.mxu0
      %v2513 = vadd.f32 0.0, %v2512
      %v2514 = vpop.f32.mrf.mxu0
      %2515 = vmatmul.bf16.gmra.mxu0 %v920
      %v2516 = vpop.f32.mrf.mxu0
      %v2517 = vadd.f32 0.0, %v2516
      %v2518 = vpop.f32.mrf.mxu0
      %v2519 = vadd.f32 0.0, %v2518
      %2520 = vmatmul.bf16.gmra.mxu0 %v921
      %v2521 = vpop.f32.mrf.mxu0
      %v2522 = vpop.f32.mrf.mxu0
      %v2523 = vadd.f32 0.0, %v2522
      %2524 = vmatmul.bf16.gmra.mxu0 %v922
      %v2525 = vpop.f32.mrf.mxu0
      %v2526 = vadd.f32 0.0, %v2525
      %v2527 = vpop.f32.mrf.mxu0
      %2528 = vmatmul.bf16.gmra.mxu0 %v923
      %v2529 = vpop.f32.mrf.mxu0
      %v2530 = vadd.f32 0.0, %v2529
      %v2531 = vpop.f32.mrf.mxu0
      %v2532 = vadd.f32 0.0, %v2531
      %2533 = vmatmul.bf16.gmra.mxu0 %v924
      %v2534 = vpop.f32.mrf.mxu0
      %v2535 = vpop.f32.mrf.mxu0
      %v2536 = vadd.f32 0.0, %v2535
      %2537 = vmatmul.bf16.gmra.mxu0 %v925
      %v2538 = vpop.f32.mrf.mxu0
      %v2539 = vadd.f32 0.0, %v2538
      %v2540 = vpop.f32.mrf.mxu0
      %2541 = vmatmul.bf16.gmra.mxu0 %v926
      %v2542 = vpop.f32.mrf.mxu0
      %v2543 = vadd.f32 0.0, %v2542
      %v2544 = vpop.f32.mrf.mxu0
      %v2545 = vadd.f32 0.0, %v2544
      %2546 = vmatmul.bf16.gmra.mxu0 %v927
      %v2547 = vpop.f32.mrf.mxu0
      %v2548 = vpop.f32.mrf.mxu0
      %v2549 = vadd.f32 0.0, %v2548
      %2550 = vmatmul.bf16.gmra.mxu0 %v928
      %v2551 = vpop.f32.mrf.mxu0
      %v2552 = vadd.f32 0.0, %v2551
      %v2553 = vpop.f32.mrf.mxu0
      %2554 = vmatmul.bf16.gmra.mxu0 %v929
      %v2555 = vpop.f32.mrf.mxu0
      %v2556 = vadd.f32 0.0, %v2555
      %v2557 = vpop.f32.mrf.mxu0
      %v2558 = vadd.f32 0.0, %v2557
      %2559 = vmatmul.bf16.gmra.mxu0 %v930
      %v2560 = vpop.f32.mrf.mxu0
      %v2561 = vpop.f32.mrf.mxu0
      %v2562 = vadd.f32 0.0, %v2561
      %2563 = vmatmul.bf16.gmra.mxu0 %v931
      %v2564 = vpop.f32.mrf.mxu0
      %v2565 = vadd.f32 0.0, %v2564
      %v2566 = vpop.f32.mrf.mxu0
      %2567 = vmatmul.bf16.gmra.mxu0 %v932
      %v2568 = vpop.f32.mrf.mxu0
      %v2569 = vadd.f32 0.0, %v2568
      %v2570 = vpop.f32.mrf.mxu0
      %v2571 = vadd.f32 0.0, %v2570
      %2572 = vmatmul.bf16.gmra.mxu0 %v933
      %v2573 = vpop.f32.mrf.mxu0
      %v2574 = vpop.f32.mrf.mxu0
      %v2575 = vadd.f32 0.0, %v2574
      %2576 = vmatmul.bf16.gmra.mxu0 %v934
      %v2577 = vpop.f32.mrf.mxu0
      %v2578 = vadd.f32 0.0, %v2577
      %v2579 = vpop.f32.mrf.mxu0
      %2580 = vmatmul.bf16.gmra.mxu0 %v935
      %v2581 = vpop.f32.mrf.mxu0
      %v2582 = vadd.f32 0.0, %v2581
      %v2583 = vpop.f32.mrf.mxu0
      %v2584 = vadd.f32 0.0, %v2583
      %2585 = vmatmul.bf16.gmra.mxu0 %v936
      %v2586 = vpop.f32.mrf.mxu0
      %v2587 = vpop.f32.mrf.mxu0
      %v2588 = vadd.f32 0.0, %v2587
      %2589 = vmatmul.bf16.gmra.mxu0 %v937
      %v2590 = vpop.f32.mrf.mxu0
      %v2591 = vadd.f32 0.0, %v2590
      %v2592 = vpop.f32.mrf.mxu0
      %2593 = vmatmul.bf16.gmra.mxu0 %v2426
      %v2594 = vpop.f32.mrf.mxu0
      %v2595 = vadd.f32 0.0, %v2594
      %v2596 = vpop.f32.mrf.mxu0
      %v2597 = vadd.f32 0.0, %v2596
      %2598 = vmatmul.bf16.gmra.mxu0 %v2427
      %v2599 = vpop.f32.mrf.mxu0
      %v2600 = vpop.f32.mrf.mxu0
      %v2601 = vadd.f32 0.0, %v2600
      %2602 = vmatmul.bf16.gmra.mxu0 %v2428
      %v2603 = vpop.f32.mrf.mxu0
      %v2604 = vadd.f32 0.0, %v2603
      %v2605 = vpop.f32.mrf.mxu0
      %2606 = vdwg.mxu0
      %v2607 = vadd.f32 %v2394, %v2504
      %v2608 = vadd.f32 %v2395, %v2506
      %v2609 = vadd.f32 %v2396, %v2510
      %v2610 = vadd.f32 %v2397, %v2513
      %v2611 = vadd.f32 %v2398, %v2517
      %v2612 = vadd.f32 %v2399, %v2519
      %v2613 = vadd.f32 %v2400, %v2523
      %v2614 = vadd.f32 %v2401, %v2526
      %v2615 = vadd.f32 %v2402, %v2530
      %v2616 = vadd.f32 %v2403, %v2532
      %v2617 = vadd.f32 %v2404, %v2536
      %v2618 = vadd.f32 %v2405, %v2539
      %v2619 = vadd.f32 %v2406, %v2543
      %v2620 = vadd.f32 %v2407, %v2545
      %v2621 = vadd.f32 %v2408, %v2549
      %v2622 = vadd.f32 %v2409, %v2552
      %v2623 = vadd.f32 %v2410, %v2556
      %v2624 = vadd.f32 %v2411, %v2558
      %v2625 = vadd.f32 %v2412, %v2562
      %v2626 = vadd.f32 %v2413, %v2565
      %v2627 = vadd.f32 %v2414, %v2569
      %v2628 = vadd.f32 %v2415, %v2571
      %v2629 = vadd.f32 %v2416, %v2575
      %v2630 = vadd.f32 %v2417, %v2578
      %v2631 = vadd.f32 %v2418, %v2582
      %v2632 = vadd.f32 %v2419, %v2584
      %v2633 = vadd.f32 %v2420, %v2588
      %v2634 = vadd.f32 %v2421, %v2591
      %v2635 = vadd.f32 %v2422, %v2595
      %v2636 = vadd.f32 %v2423, %v2597
      %v2637 = vadd.f32 %v2424, %v2601
      %v2638 = vadd.f32 %v2425, %v2604
      %v2639 = vpack.c.bf16 %v823, %v824
      %v2640 = vpack.c.bf16 %v821, %v822
      %v2641 = vpack.c.bf16 %v873, %v820
      %s2642 = scalar_lea.vmem %s2, 512
      %v2643 = vld [vmem:[%s2642] sm:$0xf]
      %v2644 = vld [vmem:[%s2642 + $0x4] sm:$0xf]
      %v2645 = vld [vmem:[%s2642 + $0x8] sm:$0xf]
      %v2646 = vld [vmem:[%s2642 + $0xc] sm:$0xf]
      %v2647 = vld [vmem:[%s2642 + $0x10] sm:$0xf]
      %v2648 = vld [vmem:[%s2642 + $0x14] sm:$0xf]
      %v2649 = vld [vmem:[%s2642 + $0x18] sm:$0xf]
      %v2650 = vld [vmem:[%s2642 + $0x1c] sm:$0xf]
      %v2651 = vld [vmem:[%s2642 + $0x20] sm:$0xf]
      %v2652 = vld [vmem:[%s2642 + $0x24] sm:$0xf]
      %v2653 = vld [vmem:[%s2642 + $0x28] sm:$0xf]
      %v2654 = vld [vmem:[%s2642 + $0x2c] sm:$0xf]
      %v2655 = vld [vmem:[%s2642 + $0x30] sm:$0xf]
      %v2656 = vld [vmem:[%s2642 + $0x34] sm:$0xf]
      %v2657 = vld [vmem:[%s2642 + $0x38] sm:$0xf]
      %v2658 = vld [vmem:[%s2642 + $0x3c] sm:$0xf]
      %v2675 = vunpack.c.l.b16 %v2643
      %v2676 = vunpack.c.l.b16 %v2644
      %v2677 = vunpack.c.l.b16 %v2645
      %v2678 = vunpack.c.l.b16 %v2646
      %v2679 = vunpack.c.l.b16 %v2647
      %v2680 = vunpack.c.l.b16 %v2648
      %v2681 = vunpack.c.l.b16 %v2649
      %v2682 = vunpack.c.l.b16 %v2650
      %v2683 = vunpack.c.l.b16 %v2651
      %v2684 = vunpack.c.l.b16 %v2652
      %v2685 = vunpack.c.l.b16 %v2653
      %v2686 = vunpack.c.l.b16 %v2654
      %v2687 = vunpack.c.l.b16 %v2655
      %v2688 = vunpack.c.l.b16 %v2656
      %v2689 = vunpack.c.l.b16 %v2657
      %v2690 = vunpack.c.l.b16 %v2658
      %v2691 = vpack.c.b16 %v2676, %v2675
      %v2692 = vpack.c.b16 %v2678, %v2677
      %v2693 = vpack.c.b16 %v2680, %v2679
      %v2694 = vpack.c.b16 %v2682, %v2681
      %v2695 = vpack.c.b16 %v2684, %v2683
      %v2696 = vpack.c.b16 %v2686, %v2685
      %v2697 = vpack.c.b16 %v2688, %v2687
      %v2698 = vpack.c.b16 %v2690, %v2689
      %2707 = vmatpush.bf16.msra.mxu0 %v2698
      %2708 = vmatpush.bf16.msra.mxu0 %v2697
      %2709 = vmatpush.bf16.msra.mxu0 %v2696
      %2710 = vmatpush.bf16.msra.mxu0 %v2695
      %2711 = vmatpush.bf16.msra.mxu0 %v2694
      %2712 = vmatpush.bf16.msra.mxu0 %v2693
      %2713 = vmatpush.bf16.msra.mxu0 %v2692
      %2714 = vmatpush.bf16.msra.mxu0 %v2691
      %2715 = vmatmul.bf16.gmra.mxu0 %v1280
      %v2716 = vpop.f32.mrf.mxu0
      %v2717 = vadd.f32 0.0, %v2716
      %v2718 = vpop.f32.mrf.mxu0
      %v2719 = vadd.f32 0.0, %v2718
      %2720 = vmatmul.bf16.gmra.mxu0 %v1281
      %v2721 = vpop.f32.mrf.mxu0
      %v2722 = vpop.f32.mrf.mxu0
      %v2723 = vadd.f32 0.0, %v2722
      %2724 = vmatmul.bf16.gmra.mxu0 %v1282
      %v2725 = vpop.f32.mrf.mxu0
      %v2726 = vadd.f32 0.0, %v2725
      %v2727 = vpop.f32.mrf.mxu0
      %2728 = vmatmul.bf16.gmra.mxu0 %v1283
      %v2729 = vpop.f32.mrf.mxu0
      %v2730 = vadd.f32 0.0, %v2729
      %v2731 = vpop.f32.mrf.mxu0
      %v2732 = vadd.f32 0.0, %v2731
      %2733 = vmatmul.bf16.gmra.mxu0 %v1284
      %v2734 = vpop.f32.mrf.mxu0
      %v2735 = vpop.f32.mrf.mxu0
      %v2736 = vadd.f32 0.0, %v2735
      %2737 = vmatmul.bf16.gmra.mxu0 %v1285
      %v2738 = vpop.f32.mrf.mxu0
      %v2739 = vadd.f32 0.0, %v2738
      %v2740 = vpop.f32.mrf.mxu0
      %2741 = vmatmul.bf16.gmra.mxu0 %v1286
      %v2742 = vpop.f32.mrf.mxu0
      %v2743 = vadd.f32 0.0, %v2742
      %v2744 = vpop.f32.mrf.mxu0
      %v2745 = vadd.f32 0.0, %v2744
      %2746 = vmatmul.bf16.gmra.mxu0 %v1287
      %v2747 = vpop.f32.mrf.mxu0
      %v2748 = vpop.f32.mrf.mxu0
      %v2749 = vadd.f32 0.0, %v2748
      %2750 = vmatmul.bf16.gmra.mxu0 %v1288
      %v2751 = vpop.f32.mrf.mxu0
      %v2752 = vadd.f32 0.0, %v2751
      %v2753 = vpop.f32.mrf.mxu0
      %2754 = vmatmul.bf16.gmra.mxu0 %v1289
      %v2755 = vpop.f32.mrf.mxu0
      %v2756 = vadd.f32 0.0, %v2755
      %v2757 = vpop.f32.mrf.mxu0
      %v2758 = vadd.f32 0.0, %v2757
      %2759 = vmatmul.bf16.gmra.mxu0 %v1290
      %v2760 = vpop.f32.mrf.mxu0
      %v2761 = vpop.f32.mrf.mxu0
      %v2762 = vadd.f32 0.0, %v2761
      %2763 = vmatmul.bf16.gmra.mxu0 %v1291
      %v2764 = vpop.f32.mrf.mxu0
      %v2765 = vadd.f32 0.0, %v2764
      %v2766 = vpop.f32.mrf.mxu0
      %2767 = vmatmul.bf16.gmra.mxu0 %v1292
      %v2768 = vpop.f32.mrf.mxu0
      %v2769 = vadd.f32 0.0, %v2768
      %v2770 = vpop.f32.mrf.mxu0
      %v2771 = vadd.f32 0.0, %v2770
      %2772 = vmatmul.bf16.gmra.mxu0 %v1293
      %v2773 = vpop.f32.mrf.mxu0
      %v2774 = vpop.f32.mrf.mxu0
      %v2775 = vadd.f32 0.0, %v2774
      %2776 = vmatmul.bf16.gmra.mxu0 %v1294
      %v2777 = vpop.f32.mrf.mxu0
      %v2778 = vadd.f32 0.0, %v2777
      %v2779 = vpop.f32.mrf.mxu0
      %2780 = vmatmul.bf16.gmra.mxu0 %v1295
      %v2781 = vpop.f32.mrf.mxu0
      %v2782 = vadd.f32 0.0, %v2781
      %v2783 = vpop.f32.mrf.mxu0
      %v2784 = vadd.f32 0.0, %v2783
      %2785 = vmatmul.bf16.gmra.mxu0 %v1296
      %v2786 = vpop.f32.mrf.mxu0
      %v2787 = vpop.f32.mrf.mxu0
      %v2788 = vadd.f32 0.0, %v2787
      %2789 = vmatmul.bf16.gmra.mxu0 %v1297
      %v2790 = vpop.f32.mrf.mxu0
      %v2791 = vadd.f32 0.0, %v2790
      %v2792 = vpop.f32.mrf.mxu0
      %2793 = vmatmul.bf16.gmra.mxu0 %v1298
      %v2794 = vpop.f32.mrf.mxu0
      %v2795 = vadd.f32 0.0, %v2794
      %v2796 = vpop.f32.mrf.mxu0
      %v2797 = vadd.f32 0.0, %v2796
      %2798 = vmatmul.bf16.gmra.mxu0 %v1299
      %v2799 = vpop.f32.mrf.mxu0
      %v2800 = vpop.f32.mrf.mxu0
      %v2801 = vadd.f32 0.0, %v2800
      %2802 = vmatmul.bf16.gmra.mxu0 %v1300
      %v2803 = vpop.f32.mrf.mxu0
      %v2804 = vadd.f32 0.0, %v2803
      %v2805 = vpop.f32.mrf.mxu0
      %2806 = vmatmul.bf16.gmra.mxu0 %v2639
      %v2807 = vpop.f32.mrf.mxu0
      %v2808 = vadd.f32 0.0, %v2807
      %v2809 = vpop.f32.mrf.mxu0
      %v2810 = vadd.f32 0.0, %v2809
      %2811 = vmatmul.bf16.gmra.mxu0 %v2640
      %v2812 = vpop.f32.mrf.mxu0
      %v2813 = vpop.f32.mrf.mxu0
      %v2814 = vadd.f32 0.0, %v2813
      %2815 = vmatmul.bf16.gmra.mxu0 %v2641
      %v2816 = vpop.f32.mrf.mxu0
      %v2817 = vadd.f32 0.0, %v2816
      %v2818 = vpop.f32.mrf.mxu0
      %2819 = vdwg.mxu0
      %v2820 = vadd.f32 %v2607, %v2717
      %v2821 = vadd.f32 %v2608, %v2719
      %v2822 = vadd.f32 %v2609, %v2723
      %v2823 = vadd.f32 %v2610, %v2726
      %v2824 = vadd.f32 %v2611, %v2730
      %v2825 = vadd.f32 %v2612, %v2732
      %v2826 = vadd.f32 %v2613, %v2736
      %v2827 = vadd.f32 %v2614, %v2739
      %v2828 = vadd.f32 %v2615, %v2743
      %v2829 = vadd.f32 %v2616, %v2745
      %v2830 = vadd.f32 %v2617, %v2749
      %v2831 = vadd.f32 %v2618, %v2752
      %v2832 = vadd.f32 %v2619, %v2756
      %v2833 = vadd.f32 %v2620, %v2758
      %v2834 = vadd.f32 %v2621, %v2762
      %v2835 = vadd.f32 %v2622, %v2765
      %v2836 = vadd.f32 %v2623, %v2769
      %v2837 = vadd.f32 %v2624, %v2771
      %v2838 = vadd.f32 %v2625, %v2775
      %v2839 = vadd.f32 %v2626, %v2778
      %v2840 = vadd.f32 %v2627, %v2782
      %v2841 = vadd.f32 %v2628, %v2784
      %v2842 = vadd.f32 %v2629, %v2788
      %v2843 = vadd.f32 %v2630, %v2791
      %v2844 = vadd.f32 %v2631, %v2795
      %v2845 = vadd.f32 %v2632, %v2797
      %v2846 = vadd.f32 %v2633, %v2801
      %v2847 = vadd.f32 %v2634, %v2804
      %v2848 = vadd.f32 %v2635, %v2808
      %v2849 = vadd.f32 %v2636, %v2810
      %v2850 = vadd.f32 %v2637, %v2814
      %v2851 = vadd.f32 %v2638, %v2817
      %v2852 = vld [vmem:[%s4] sm:$0x1]
      %v2854 = vperm.slane %v2852, 0
      %v2856 = vadd.f32 %v2820, %v2854
      %v2857 = vadd.f32 %v2821, %v2854
      %v2858 = vadd.f32 %v2822, %v2854
      %v2859 = vadd.f32 %v2823, %v2854
      %v2860 = vadd.f32 %v2824, %v2854
      %v2861 = vadd.f32 %v2825, %v2854
      %v2862 = vadd.f32 %v2826, %v2854
      %v2863 = vadd.f32 %v2827, %v2854
      %v2864 = vadd.f32 %v2828, %v2854
      %v2865 = vadd.f32 %v2829, %v2854
      %v2866 = vadd.f32 %v2830, %v2854
      %v2867 = vadd.f32 %v2831, %v2854
      %v2868 = vadd.f32 %v2832, %v2854
      %v2869 = vadd.f32 %v2833, %v2854
      %v2870 = vadd.f32 %v2834, %v2854
      %v2871 = vadd.f32 %v2835, %v2854
      %v2872 = vadd.f32 %v2836, %v2854
      %v2873 = vadd.f32 %v2837, %v2854
      %v2874 = vadd.f32 %v2838, %v2854
      %v2875 = vadd.f32 %v2839, %v2854
      %v2876 = vadd.f32 %v2840, %v2854
      %v2877 = vadd.f32 %v2841, %v2854
      %v2878 = vadd.f32 %v2842, %v2854
      %v2879 = vadd.f32 %v2843, %v2854
      %v2880 = vadd.f32 %v2844, %v2854
      %v2881 = vadd.f32 %v2845, %v2854
      %v2882 = vadd.f32 %v2846, %v2854
      %v2883 = vadd.f32 %v2847, %v2854
      %v2884 = vadd.f32 %v2848, %v2854
      %v2885 = vadd.f32 %v2849, %v2854
      %v2886 = vadd.f32 %v2850, %v2854
      %v2887 = vadd.f32 %v2851, %v2854
      %v2888 = vmax.f32 %v2856, 0.0
      %v2889 = vmax.f32 %v2857, 0.0
      %v2890 = vmax.f32 %v2858, 0.0
      %v2891 = vmax.f32 %v2859, 0.0
      %v2892 = vmax.f32 %v2860, 0.0
      %v2893 = vmax.f32 %v2861, 0.0
      %v2894 = vmax.f32 %v2862, 0.0
      %v2895 = vmax.f32 %v2863, 0.0
      %v2896 = vmax.f32 %v2864, 0.0
      %v2897 = vmax.f32 %v2865, 0.0
      %v2898 = vmax.f32 %v2866, 0.0
      %v2899 = vmax.f32 %v2867, 0.0
      %v2900 = vmax.f32 %v2868, 0.0
      %v2901 = vmax.f32 %v2869, 0.0
      %v2902 = vmax.f32 %v2870, 0.0
      %v2903 = vmax.f32 %v2871, 0.0
      %v2904 = vmax.f32 %v2872, 0.0
      %v2905 = vmax.f32 %v2873, 0.0
      %v2906 = vmax.f32 %v2874, 0.0
      %v2907 = vmax.f32 %v2875, 0.0
      %v2908 = vmax.f32 %v2876, 0.0
      %v2909 = vmax.f32 %v2877, 0.0
      %v2910 = vmax.f32 %v2878, 0.0
      %v2911 = vmax.f32 %v2879, 0.0
      %v2912 = vmax.f32 %v2880, 0.0
      %v2913 = vmax.f32 %v2881, 0.0
      %v2914 = vmax.f32 %v2882, 0.0
      %v2915 = vmax.f32 %v2883, 0.0
      %v2916 = vmax.f32 %v2884, 0.0
      %v2917 = vmax.f32 %v2885, 0.0
      %v2918 = vmax.f32 %v2886, 0.0
      %v2919 = vmax.f32 %v2887, 0.0
      %v2920 = vpack.c.bf16 %v2888, %v2888
      %v2921 = vpack.c.bf16 %v2889, %v2889
      %v2922 = vpack.c.bf16 %v2890, %v2890
      %v2923 = vpack.c.bf16 %v2891, %v2891
      %v2924 = vpack.c.bf16 %v2892, %v2892
      %v2925 = vpack.c.bf16 %v2893, %v2893
      %v2926 = vpack.c.bf16 %v2894, %v2894
      %v2927 = vpack.c.bf16 %v2895, %v2895
      %v2928 = vpack.c.bf16 %v2896, %v2896
      %v2929 = vpack.c.bf16 %v2897, %v2897
      %v2930 = vpack.c.bf16 %v2898, %v2898
      %v2931 = vpack.c.bf16 %v2899, %v2899
      %v2932 = vpack.c.bf16 %v2900, %v2900
      %v2933 = vpack.c.bf16 %v2901, %v2901
      %v2934 = vpack.c.bf16 %v2902, %v2902
      %v2935 = vpack.c.bf16 %v2903, %v2903
      %v2936 = vpack.c.bf16 %v2904, %v2904
      %v2937 = vpack.c.bf16 %v2905, %v2905
      %v2938 = vpack.c.bf16 %v2906, %v2906
      %v2939 = vpack.c.bf16 %v2907, %v2907
      %v2940 = vpack.c.bf16 %v2908, %v2908
      %v2941 = vpack.c.bf16 %v2909, %v2909
      %v2942 = vpack.c.bf16 %v2910, %v2910
      %v2943 = vpack.c.bf16 %v2911, %v2911
      %v2944 = vpack.c.bf16 %v2912, %v2912
      %v2945 = vpack.c.bf16 %v2913, %v2913
      %v2946 = vpack.c.bf16 %v2914, %v2914
      %v2947 = vpack.c.bf16 %v2915, %v2915
      %v2948 = vpack.c.bf16 %v2916, %v2916
      %v2949 = vpack.c.bf16 %v2917, %v2917
      %v2950 = vpack.c.bf16 %v2918, %v2918
      %v2951 = vpack.c.bf16 %v2919, %v2919
      %2952 = vst [vmem:[%s224] sm:$0xf] %v2920
      %2953 = vst [vmem:[%s224 + $0x4] sm:$0xf] %v2921
      %2954 = vst [vmem:[%s224 + $0x8] sm:$0xf] %v2922
      %2955 = vst [vmem:[%s224 + $0xc] sm:$0xf] %v2923
      %2956 = vst [vmem:[%s224 + $0x10] sm:$0xf] %v2924
      %2957 = vst [vmem:[%s224 + $0x14] sm:$0xf] %v2925
      %2958 = vst [vmem:[%s224 + $0x18] sm:$0xf] %v2926
      %2959 = vst [vmem:[%s224 + $0x1c] sm:$0xf] %v2927
      %2960 = vst [vmem:[%s224 + $0x20] sm:$0xf] %v2928
      %2961 = vst [vmem:[%s224 + $0x24] sm:$0xf] %v2929
      %2962 = vst [vmem:[%s224 + $0x28] sm:$0xf] %v2930
      %2963 = vst [vmem:[%s224 + $0x2c] sm:$0xf] %v2931
      %2964 = vst [vmem:[%s224 + $0x30] sm:$0xf] %v2932
      %2965 = vst [vmem:[%s224 + $0x34] sm:$0xf] %v2933
      %2966 = vst [vmem:[%s224 + $0x38] sm:$0xf] %v2934
      %2967 = vst [vmem:[%s224 + $0x3c] sm:$0xf] %v2935
      %2968 = vst [vmem:[%s224 + $0x40] sm:$0xf] %v2936
      %2969 = vst [vmem:[%s224 + $0x44] sm:$0xf] %v2937
      %2970 = vst [vmem:[%s224 + $0x48] sm:$0xf] %v2938
      %2971 = vst [vmem:[%s224 + $0x4c] sm:$0xf] %v2939
      %2972 = vst [vmem:[%s224 + $0x50] sm:$0xf] %v2940
      %2973 = vst [vmem:[%s224 + $0x54] sm:$0xf] %v2941
      %2974 = vst [vmem:[%s224 + $0x58] sm:$0xf] %v2942
      %2975 = vst [vmem:[%s224 + $0x5c] sm:$0xf] %v2943
      %2976 = vst [vmem:[%s224 + $0x60] sm:$0xf] %v2944
      %2977 = vst [vmem:[%s224 + $0x64] sm:$0xf] %v2945
      %2978 = vst [vmem:[%s224 + $0x68] sm:$0xf] %v2946
      %2979 = vst [vmem:[%s224 + $0x6c] sm:$0xf] %v2947
      %2980 = vst [vmem:[%s224 + $0x70] sm:$0xf] %v2948
      %2981 = vst [vmem:[%s224 + $0x74] sm:$0xf] %v2949
      %2982 = vst [vmem:[%s224 + $0x78] sm:$0xf] %v2950
      %2983 = vst [vmem:[%s224 + $0x7c] sm:$0xf] %v2951
      %p2984 = scmp.lt.s32.totalorder %s16, 1
      %s2985 = scalar_select %p2984, %s16, 1
      %s2986 = smul.addr %s2985, 32
      %s2987 = smul.addr %s2986, 4
      %s2988 = scalar_lea.vmem %s5, %s2987
      // Predicated region
      $region41: #{conv_block_forward.1} parent=39 // pred_check
        %p2989 = pneg %p144
      $region42: #{conv_block_forward.1} parent=39 // pred_check_branch
        %2991 = sbr.rel (%p2989) target = $region44
      $region43: #{conv_block_forward.1} parent=39 // pred_region
        _
      $region44: #{conv_block_forward.1} parent=39 // pred_fallthru
        _
    $region40: #{conv_block_forward.1} parent=5 // pred_fallthru
      _
    %p2992 = scmp.le.s32.totalorder 2, %s11
    // Predicated region
    $region45: #{conv_block_forward.1} parent=5 // pred_check
      %p2993 = pneg %p2992
    $region46: #{conv_block_forward.1} parent=5 // pred_check_branch
      %2995 = sbr.rel (%p2993) target = $region48
    $region47: #{conv_block_forward.1} parent=5 // pred_region
      %s2996 = ssub.s32 %s11, 2
      // Predicated region
      $region49: #{conv_block_forward.1} parent=47 // pred_check
        %p2997 = pneg %p150
      $region50: #{conv_block_forward.1} parent=47 // pred_check_branch
        %2999 = sbr.rel (%p2997) target = $region52
      $region51: #{conv_block_forward.1} parent=47 // pred_region
        %p3000 = scmp.lt.s32.totalorder %s17, 1
        %s3001 = scalar_select %p3000, %s17, 1
        %s3002 = smul.addr %s3001, 32
        %s3003 = smul.addr %s3002, 4
        %s3004 = scalar_lea.vmem %s5, %s3003
      $region52: #{conv_block_forward.1} parent=47 // pred_fallthru
        _
    $region48: #{conv_block_forward.1} parent=5 // pred_fallthru
      _
  $region6: #{conv_block_forward.1} parent=0 // loop_footer
    %s15 = sadd.s32 1, %s11
  $region7: #{conv_block_forward.1} parent=0 // loop_footer_branch
    %10 = sbr.rel target = $region3
  $region8: #{conv_block_forward.1} parent=0 // loop_exit
    _

</llo_original>
